<compile_context>
chip_gen: v7x
topology: tpu7x:2x2x1
jax: 0.10.0
libtpu: 0.0.40
codegen_flags: <defaults>
</compile_context>

<pallas_src>
import functools

import jax
import jax.numpy as jnp
from jax.experimental import pallas as pl
from jax.experimental.pallas import tpu as pltpu

NEG_SLOPE = 0.01
BN_EPS = 1e-5
C_PAD = 128          # lane-dense channel padding (one full MXU/lane tile)


def _lrelu(v):
    return jnp.where(v >= 0, v, NEG_SLOPE * v)


# ---------------------------------------------------------------------------
# Pallas kernels
# ---------------------------------------------------------------------------
def _conv1_kernel(a_ref, w_ref, p_ref, o_ref):
    """o = bf16( BN( leaky_relu(A @ W + bias) ) );  p rows = [bias, scale, shift]."""
    y = jnp.dot(a_ref[...], w_ref[...], preferred_element_type=jnp.float32)
    y = _lrelu(y + p_ref[0:1, :])
    o_ref[...] = (y * p_ref[1:2, :] + p_ref[2:3, :]).astype(o_ref.dtype)


def _conv2_fc_softmax_kernel(a_ref, w_ref, p_ref, wfc_ref, bfc_ref, o_ref, *,
                             n_batch, n_spatial):
    """conv2 matmul + bias + leaky_relu + BN2 + FC(+bias) + leaky_relu + softmax.

    The [n_batch*n_spatial, 128] conv2 activation stays in VMEM. The FC
    contraction over (spatial, channel) is done per sample with a small VPU
    multiply-reduce (~nc*64*128 MACs), which avoids any in-kernel
    sublane<->lane flatten of the activation. Output is [num_classes, n_batch]
    (class-major); the wrapper transposes the tiny result back.
    """
    h = jnp.dot(a_ref[...], w_ref[...], preferred_element_type=jnp.float32)
    h = _lrelu(h + p_ref[0:1, :])
    h = h * p_ref[1:2, :] + p_ref[2:3, :]                  # [n_batch*sp, 128] f32

    wfc = wfc_ref[...]                                     # [nc, sp, 128], hoisted
    for n in range(n_batch):                               # static unroll (tiny N)
        h_n = h[n * n_spatial:(n + 1) * n_spatial, :]      # [sp, 128]
        s = jnp.sum(wfc * h_n[None, :, :], axis=-1)        # [nc, sp]
        logit = jnp.sum(s, axis=-1, keepdims=True) + bfc_ref[...]   # [nc, 1]
        logit = _lrelu(logit)
        m = jnp.max(logit, axis=0, keepdims=True)
        e = jnp.exp(logit - m)
        o_ref[:, n:n + 1] = e / jnp.sum(e, axis=0, keepdims=True)


def _full_spec(shape):
    # whole-array block (block_shape == array shape satisfies TPU tiling rule)
    return pl.BlockSpec(shape, lambda i: (0,) * len(shape))


def conv1_call(a, w, p):
    m_rows = a.shape[0]
    return pl.pallas_call(
        _conv1_kernel,
        out_shape=jax.ShapeDtypeStruct((m_rows, C_PAD), jnp.bfloat16),
        grid=(1,),
        in_specs=[_full_spec(a.shape), _full_spec(w.shape), _full_spec(p.shape)],
        out_specs=_full_spec((m_rows, C_PAD)),
        compiler_params=pltpu.CompilerParams(dimension_semantics=("arbitrary",)),
    )(a, w, p)


def conv2_fc_call(a, w, p, wfc, bfc, *, n_batch, n_spatial, num_classes):
    kern = functools.partial(_conv2_fc_softmax_kernel,
                             n_batch=n_batch, n_spatial=n_spatial)
    return pl.pallas_call(
        kern,
        out_shape=jax.ShapeDtypeStruct((num_classes, n_batch), jnp.float32),
        grid=(1,),
        in_specs=[_full_spec(a.shape), _full_spec(w.shape), _full_spec(p.shape),
                  _full_spec(wfc.shape), _full_spec(bfc.shape)],
        out_specs=_full_spec((num_classes, n_batch)),
        compiler_params=pltpu.CompilerParams(dimension_semantics=("arbitrary",)),
    )(a, w, p, wfc, bfc)


# ---------------------------------------------------------------------------
# One-time parameter preparation (hoisted out of the per-forward path)
# ---------------------------------------------------------------------------
def _pack_conv_params(w, b, gamma, beta, mean, var):
    cout, cin, k, _, _ = w.shape
    wm = jnp.transpose(w, (2, 3, 4, 1, 0)).reshape(cin * k * k * k, cout)
    wm = jnp.pad(wm, ((0, 0), (0, C_PAD - cout))).astype(jnp.bfloat16)
    scale = gamma / jnp.sqrt(var + BN_EPS)
    shift = beta - mean * scale
    p = jnp.stack([b, scale, shift], axis=0)                       # (3, cout)
    p = jnp.pad(p, ((0, 0), (0, C_PAD - cout))).astype(jnp.float32)  # (3, 128)
    return wm, p


def prepare_params(params, out_spatial):
    """Reshape/pad weights, fold BN, reorder FC columns -- done once."""
    w1m, p1 = _pack_conv_params(params["w1"], params["b1"], params["g1"],
                                params["be1"], params["m1"], params["v1"])
    w2m, p2 = _pack_conv_params(params["w2"], params["b2"], params["g2"],
                                params["be2"], params["m2"], params["v2"])
    nc = params["wfc"].shape[0]
    cout = params["w2"].shape[0]
    od, oh, ow = out_spatial
    # PyTorch .view(N, -1) flattens NCDHW -> column = c*D*H*W + d*H*W + h*W + w.
    # Kernel activation rows are (d, h, w)-ordered with channels last, so
    # reorder the FC weight once to [nc, d*h*w, c] and zero-pad channels.
    wfc = params["wfc"].reshape(nc, cout, od, oh, ow)
    wfc = jnp.transpose(wfc, (0, 2, 3, 4, 1)).reshape(nc, od * oh * ow, cout)
    wfc = jnp.pad(wfc, ((0, 0), (0, 0), (0, C_PAD - cout))).astype(jnp.float32)
    bfc = params["bfc"].reshape(nc, 1).astype(jnp.float32)
    return {"w1": w1m, "p1": p1, "w2": w2m, "p2": p2, "wfc": wfc, "bfc": bfc}


# ---------------------------------------------------------------------------
# Channels-last im2col glue (tiny XLA ops, stays in bf16)
# ---------------------------------------------------------------------------
def _im2col_ndhwc(x, k, s):
    """x: [N, D, H, W, C] -> [N*Do*Ho*Wo, k^3*C]; column order (kd, kh, kw, c)."""
    n, d, h, w, c = x.shape
    do = (d - k) // s + 1
    ho = (h - k) // s + 1
    wo = (w - k) // s + 1
    cols = []
    for kd in range(k):
        for kh in range(k):
            for kw in range(k):
                cols.append(x[:, kd:kd + s * (do - 1) + 1:s,
                               kh:kh + s * (ho - 1) + 1:s,
                               kw:kw + s * (wo - 1) + 1:s, :])
    a = jnp.concatenate(cols, axis=-1)                 # [n, do, ho, wo, k^3*c]
    return a.reshape(n * do * ho * wo, k * k * k * c), (n, do, ho, wo)


def make_forward(k1, s1, k2, s2, num_classes):
    @jax.jit
    def forward(x, prep):
        # x: [N, C, D, H, W] (PyTorch NCDHW); converted once to channels-last bf16.
        x = jnp.transpose(x, (0, 2, 3, 4, 1)).astype(jnp.bfloat16)
        a1, (n, d1, h1, w1) = _im2col_ndhwc(x, k1, s1)
        y1 = conv1_call(a1, prep["w1"], prep["p1"])            # [n*d1*h1*w1, 128] bf16
        cin2 = prep["w2"].shape[0] // (k2 * k2 * k2)           # real conv2 in-channels
        y1 = y1.reshape(n, d1, h1, w1, C_PAD)[..., :cin2]
        a2, (_, d2, h2, w2) = _im2col_ndhwc(y1, k2, s2)
        out_t = conv2_fc_call(a2, prep["w2"], prep["p2"], prep["wfc"], prep["bfc"],
                              n_batch=n, n_spatial=d2 * h2 * w2,
                              num_classes=num_classes)
        return out_t.T                                         # [N, num_classes]
    return forward


# ---------------------------------------------------------------------------
# Pure-JAX f32 reference (for correctness check)
# ---------------------------------------------------------------------------
def ref_forward(x, params):
    def conv(v, w, b, s):
        y = jax.lax.conv_general_dilated(
            v, w, (s, s, s), "VALID",
            dimension_numbers=("NCDHW", "OIDHW", "NCDHW"))
        return y + b.reshape(1, -1, 1, 1, 1)

    def bn(v, gamma, beta, mean, var):
        scale = gamma / jnp.sqrt(var + BN_EPS)
        shift = beta - mean * scale
        return v * scale.reshape(1, -1, 1, 1, 1) + shift.reshape(1, -1, 1, 1, 1)

    x = bn(_lrelu(conv(x, params["w1"], params["b1"], params["s1"])),
           params["g1"], params["be1"], params["m1"], params["v1"])
    x = bn(_lrelu(conv(x, params["w2"], params["b2"], params["s2"])),
           params["g2"], params["be2"], params["m2"], params["v2"])
    x = x.reshape(x.shape[0], -1)
    x = _lrelu(x @ params["wfc"].T + params["bfc"])
    return jax.nn.softmax(x, axis=1)


# ---------------------------------------------------------------------------
# Main
# ---------------------------------------------------------------------------
if __name__ == "__main__":
    # Module config: numStructureClass=5, convpara=[3,1,3,1], fcNeurons=1920
    num_classes = 5
    o_channels = 30                # 3 * 10
    k1, s1, k2, s2 = 3, 1, 3, 1
    N, Cin, D, H, W = 2, 3, 8, 8, 8
    d1 = (D - k1) // s1 + 1        # 6
    d2 = (d1 - k2) // s2 + 1       # 4
    fc_neurons = o_channels * d2 * d2 * d2   # 1920

    key = jax.random.PRNGKey(0)
    keys = jax.random.split(key, 12)
    params = {
        "w1": jax.random.normal(keys[0], (o_channels, Cin, k1, k1, k1), jnp.float32) * 0.1,
        "b1": jax.random.normal(keys[1], (o_channels,), jnp.float32) * 0.1,
        "g1": 1.0 + 0.1 * jax.random.normal(keys[2], (o_channels,), jnp.float32),
        "be1": 0.1 * jax.random.normal(keys[3], (o_channels,), jnp.float32),
        "m1": 0.1 * jax.random.normal(keys[4], (o_channels,), jnp.float32),
        "v1": 1.0 + 0.5 * jax.random.uniform(keys[5], (o_channels,), jnp.float32),
        "s1": s1,
        "w2": jax.random.normal(keys[6], (o_channels, o_channels, k2, k2, k2), jnp.float32) * 0.05,
        "b2": jax.random.normal(keys[7], (o_channels,), jnp.float32) * 0.1,
        "g2": 1.0 + 0.1 * jax.random.normal(keys[8], (o_channels,), jnp.float32),
        "be2": 0.1 * jax.random.normal(keys[9], (o_channels,), jnp.float32),
        "m2": 0.1 * jax.random.normal(keys[10], (o_channels,), jnp.float32),
        "v2": 1.0 + 0.5 * jax.random.uniform(keys[11], (o_channels,), jnp.float32),
        "s2": s2,
    }
    kfc = jax.random.split(keys[0], 2)
    params["wfc"] = jax.random.normal(kfc[0], (num_classes, fc_neurons), jnp.float32) * 0.02
    params["bfc"] = jax.random.normal(kfc[1], (num_classes,), jnp.float32) * 0.1

    x = jax.random.normal(jax.random.PRNGKey(1), (N, Cin, D, H, W), jnp.float32)

    prep = prepare_params(params, out_spatial=(d2, d2, d2))   # one-time prep
    forward = make_forward(k1, s1, k2, s2, num_classes)

    out = jax.block_until_ready(forward(x, prep))
    ref = jax.block_until_ready(ref_forward(x, params))

    assert out.shape == (N, num_classes), out.shape
    # bf16 matmul operands (f32 accumulation) => loosened tolerance vs f32 ref.
    assert jnp.allclose(out, ref, rtol=3e-2, atol=3e-2), (out, ref)
    assert jnp.allclose(jnp.sum(out, axis=1), 1.0, atol=1e-4)

    print("KERNEL_OK")
</pallas_src>

<mosaic_0001>
module attributes {stable_mosaic.version = 11 : i64} {
  func.func @_conv1_kernel(%arg0: i32, %arg1: memref<432x81xbf16, #tpu.memory_space<vmem>>, %arg2: memref<81x128xbf16, #tpu.memory_space<vmem>>, %arg3: memref<3x128xf32, #tpu.memory_space<vmem>>, %arg4: memref<432x128xbf16, #tpu.memory_space<vmem>>) attributes {dimension_semantics = [#tpu.dimension_semantics<arbitrary>], iteration_bounds = array<i64: 1>, scalar_prefetch = 0 : i64, scratch_operands = 0 : i64, tpu.core_type = #tpu.core_type<tc>, window_params = [{pipeline_mode = #tpu.pipeline_mode<synchronous>, transform_indices = @transform_0, window_bounds = array<i64: 432, 81>}, {pipeline_mode = #tpu.pipeline_mode<synchronous>, transform_indices = @transform_1, window_bounds = array<i64: 81, 128>}, {pipeline_mode = #tpu.pipeline_mode<synchronous>, transform_indices = @transform_2, window_bounds = array<i64: 3, 128>}, {pipeline_mode = #tpu.pipeline_mode<synchronous>, transform_indices = @transform_3, window_bounds = array<i64: 432, 128>}]} {
    %c0 = arith.constant 0 : index
    %c0_0 = arith.constant 0 : index
    %0 = vector.load %arg1[%c0, %c0_0] : memref<432x81xbf16, #tpu.memory_space<vmem>>, vector<432x81xbf16>
    %c0_1 = arith.constant 0 : index
    %c0_2 = arith.constant 0 : index
    %1 = vector.load %arg2[%c0_1, %c0_2] : memref<81x128xbf16, #tpu.memory_space<vmem>>, vector<81x128xbf16>
    %cst = arith.constant dense<0.000000e+00> : vector<432x128xf32>
    %2 = tpu.matmul %0, %1, %cst {dimension_numbers = #tpu.dot_dimension_numbers<[1], [0], [0], [1], [0, 0, 1, 1], [], []>} : vector<432x81xbf16>, vector<81x128xbf16>, vector<432x128xf32> -> vector<432x128xf32>
    %c0_3 = arith.constant 0 : index
    %c0_4 = arith.constant 0 : index
    %3 = vector.load %arg3[%c0_3, %c0_4] : memref<3x128xf32, #tpu.memory_space<vmem>>, vector<1x128xf32>
    %4 = vector.broadcast %3 : vector<1x128xf32> to vector<432x128xf32>
    %5 = arith.addf %2, %4 : vector<432x128xf32>
    %cst_5 = arith.constant 0.000000e+00 : f32
    %6 = vector.broadcast %cst_5 : f32 to vector<432x128xf32>
    %7 = arith.cmpf oge, %5, %6 : vector<432x128xf32>
    %cst_6 = arith.constant 0.00999999977 : f32
    %8 = vector.broadcast %cst_6 : f32 to vector<432x128xf32>
    %9 = arith.mulf %8, %5 : vector<432x128xf32>
    %10 = arith.select %7, %5, %9 : vector<432x128xi1>, vector<432x128xf32>
    %c1 = arith.constant 1 : index
    %c0_7 = arith.constant 0 : index
    %11 = vector.load %arg3[%c1, %c0_7] : memref<3x128xf32, #tpu.memory_space<vmem>>, vector<1x128xf32>
    %12 = vector.broadcast %11 : vector<1x128xf32> to vector<432x128xf32>
    %13 = arith.mulf %10, %12 : vector<432x128xf32>
    %c2 = arith.constant 2 : index
    %c0_8 = arith.constant 0 : index
    %14 = vector.load %arg3[%c2, %c0_8] : memref<3x128xf32, #tpu.memory_space<vmem>>, vector<1x128xf32>
    %15 = vector.broadcast %14 : vector<1x128xf32> to vector<432x128xf32>
    %16 = arith.addf %13, %15 : vector<432x128xf32>
    %17 = arith.truncf %16 : vector<432x128xf32> to vector<432x128xbf16>
    %c0_9 = arith.constant 0 : index
    %c0_10 = arith.constant 0 : index
    %18 = vector.load %arg4[%c0_9, %c0_10] : memref<432x128xbf16, #tpu.memory_space<vmem>>, vector<432x128xbf16>
    tpu.vector_store %arg4[%c0_9, %c0_10], %17 {strides = array<i32>} : memref<432x128xbf16, #tpu.memory_space<vmem>>, vector<432x128xbf16>,
    return
  }
  func.func @transform_0(%arg0: i32) -> (i32, i32) {
    %c0_i32 = arith.constant 0 : i32
    %c0_i32_0 = arith.constant 0 : i32
    %c0_i32_1 = arith.constant 0 : i32
    return %c0_i32, %c0_i32_0 : i32, i32
  }
  func.func @transform_1(%arg0: i32) -> (i32, i32) {
    %c0_i32 = arith.constant 0 : i32
    %c0_i32_0 = arith.constant 0 : i32
    %c0_i32_1 = arith.constant 0 : i32
    return %c0_i32, %c0_i32_0 : i32, i32
  }
  func.func @transform_2(%arg0: i32) -> (i32, i32) {
    %c0_i32 = arith.constant 0 : i32
    %c0_i32_0 = arith.constant 0 : i32
    %c0_i32_1 = arith.constant 0 : i32
    return %c0_i32, %c0_i32_0 : i32, i32
  }
  func.func @transform_3(%arg0: i32) -> (i32, i32) {
    %c0_i32 = arith.constant 0 : i32
    %c0_i32_0 = arith.constant 0 : i32
    %c0_i32_1 = arith.constant 0 : i32
    return %c0_i32, %c0_i32_0 : i32, i32
  }
}

module attributes {stable_mosaic.version = 11 : i64} {
  func.func @_conv2_fc_softmax_kernel(%arg0: i32, %arg1: memref<128x810xbf16, #tpu.memory_space<vmem>>, %arg2: memref<810x128xbf16, #tpu.memory_space<vmem>>, %arg3: memref<3x128xf32, #tpu.memory_space<vmem>>, %arg4: memref<5x64x128xf32, #tpu.memory_space<vmem>>, %arg5: memref<5x1xf32, #tpu.memory_space<vmem>>, %arg6: memref<5x2xf32, #tpu.memory_space<vmem>>) attributes {dimension_semantics = [#tpu.dimension_semantics<arbitrary>], iteration_bounds = array<i64: 1>, scalar_prefetch = 0 : i64, scratch_operands = 0 : i64, tpu.core_type = #tpu.core_type<tc>, window_params = [{pipeline_mode = #tpu.pipeline_mode<synchronous>, transform_indices = @transform_0, window_bounds = array<i64: 128, 810>}, {pipeline_mode = #tpu.pipeline_mode<synchronous>, transform_indices = @transform_1, window_bounds = array<i64: 810, 128>}, {pipeline_mode = #tpu.pipeline_mode<synchronous>, transform_indices = @transform_2, window_bounds = array<i64: 3, 128>}, {pipeline_mode = #tpu.pipeline_mode<synchronous>, transform_indices = @transform_3, window_bounds = array<i64: 5, 64, 128>}, {pipeline_mode = #tpu.pipeline_mode<synchronous>, transform_indices = @transform_4, window_bounds = array<i64: 5, 1>}, {pipeline_mode = #tpu.pipeline_mode<synchronous>, transform_indices = @transform_5, window_bounds = array<i64: 5, 2>}]} {
    %c0 = arith.constant 0 : index
    %c0_0 = arith.constant 0 : index
    %0 = vector.load %arg1[%c0, %c0_0] : memref<128x810xbf16, #tpu.memory_space<vmem>>, vector<128x810xbf16>
    %c0_1 = arith.constant 0 : index
    %c0_2 = arith.constant 0 : index
    %1 = vector.load %arg2[%c0_1, %c0_2] : memref<810x128xbf16, #tpu.memory_space<vmem>>, vector<810x128xbf16>
    %cst = arith.constant dense<0.000000e+00> : vector<128x128xf32>
    %2 = tpu.matmul %0, %1, %cst {dimension_numbers = #tpu.dot_dimension_numbers<[1], [0], [0], [1], [0, 0, 1, 1], [], []>} : vector<128x810xbf16>, vector<810x128xbf16>, vector<128x128xf32> -> vector<128x128xf32>
    %c0_3 = arith.constant 0 : index
    %c0_4 = arith.constant 0 : index
    %3 = vector.load %arg3[%c0_3, %c0_4] : memref<3x128xf32, #tpu.memory_space<vmem>>, vector<1x128xf32>
    %4 = vector.broadcast %3 : vector<1x128xf32> to vector<128x128xf32>
    %5 = arith.addf %2, %4 : vector<128x128xf32>
    %cst_5 = arith.constant 0.000000e+00 : f32
    %6 = vector.broadcast %cst_5 : f32 to vector<128x128xf32>
    %7 = arith.cmpf oge, %5, %6 : vector<128x128xf32>
    %cst_6 = arith.constant 0.00999999977 : f32
    %8 = vector.broadcast %cst_6 : f32 to vector<128x128xf32>
    %9 = arith.mulf %8, %5 : vector<128x128xf32>
    %10 = arith.select %7, %5, %9 : vector<128x128xi1>, vector<128x128xf32>
    %c1 = arith.constant 1 : index
    %c0_7 = arith.constant 0 : index
    %11 = vector.load %arg3[%c1, %c0_7] : memref<3x128xf32, #tpu.memory_space<vmem>>, vector<1x128xf32>
    %12 = vector.broadcast %11 : vector<1x128xf32> to vector<128x128xf32>
    %13 = arith.mulf %10, %12 : vector<128x128xf32>
    %c2 = arith.constant 2 : index
    %c0_8 = arith.constant 0 : index
    %14 = vector.load %arg3[%c2, %c0_8] : memref<3x128xf32, #tpu.memory_space<vmem>>, vector<1x128xf32>
    %15 = vector.broadcast %14 : vector<1x128xf32> to vector<128x128xf32>
    %16 = arith.addf %13, %15 : vector<128x128xf32>
    %c0_9 = arith.constant 0 : index
    %c0_10 = arith.constant 0 : index
    %c0_11 = arith.constant 0 : index
    %17 = vector.load %arg4[%c0_9, %c0_10, %c0_11] : memref<5x64x128xf32, #tpu.memory_space<vmem>>, vector<5x64x128xf32>
    %18 = vector.extract_strided_slice %16 {offsets = [0, 0], sizes = [64, 128], strides = [1, 1]} : vector<128x128xf32> to vector<64x128xf32>
    %19 = vector.shape_cast %18 : vector<64x128xf32> to vector<1x64x128xf32>
    %20 = vector.broadcast %19 : vector<1x64x128xf32> to vector<5x64x128xf32>
    %21 = arith.mulf %17, %20 : vector<5x64x128xf32>
    %cst_12 = arith.constant dense<0.000000e+00> : vector<5x64xf32>
    %22 = vector.multi_reduction <add>, %21, %cst_12 [2] : vector<5x64x128xf32> to vector<5x64xf32>
    %cst_13 = arith.constant dense<0.000000e+00> : vector<5xf32>
    %23 = vector.multi_reduction <add>, %22, %cst_13 [1] : vector<5x64xf32> to vector<5xf32>
    %24 = vector.shape_cast %23 : vector<5xf32> to vector<5x1xf32>
    %c0_14 = arith.constant 0 : index
    %c0_15 = arith.constant 0 : index
    %25 = vector.load %arg5[%c0_14, %c0_15] : memref<5x1xf32, #tpu.memory_space<vmem>>, vector<5x1xf32>
    %26 = arith.addf %24, %25 : vector<5x1xf32>
    %cst_16 = arith.constant 0.000000e+00 : f32
    %27 = vector.broadcast %cst_16 : f32 to vector<5x1xf32>
    %28 = arith.cmpf oge, %26, %27 : vector<5x1xf32>
    %cst_17 = arith.constant 0.00999999977 : f32
    %29 = vector.broadcast %cst_17 : f32 to vector<5x1xf32>
    %30 = arith.mulf %29, %26 : vector<5x1xf32>
    %31 = arith.select %28, %26, %30 : vector<5x1xi1>, vector<5x1xf32>
    %cst_18 = arith.constant dense<0xFF800000> : vector<1xf32>
    %32 = vector.multi_reduction <maximumf>, %31, %cst_18 [0] : vector<5x1xf32> to vector<1xf32>
    %33 = vector.shape_cast %32 : vector<1xf32> to vector<1x1xf32>
    %34 = vector.broadcast %33 : vector<1x1xf32> to vector<5x1xf32>
    %35 = arith.subf %31, %34 : vector<5x1xf32>
    %36 = math.exp %35 : vector<5x1xf32>
    %cst_19 = arith.constant dense<0.000000e+00> : vector<1xf32>
    %37 = vector.multi_reduction <add>, %36, %cst_19 [0] : vector<5x1xf32> to vector<1xf32>
    %38 = vector.shape_cast %37 : vector<1xf32> to vector<1x1xf32>
    %39 = vector.broadcast %38 : vector<1x1xf32> to vector<5x1xf32>
    %40 = arith.divf %36, %39 : vector<5x1xf32>
    %c0_20 = arith.constant 0 : index
    %c0_21 = arith.constant 0 : index
    %41 = vector.load %arg6[%c0_20, %c0_21] : memref<5x2xf32, #tpu.memory_space<vmem>>, vector<5x1xf32>
    tpu.vector_store %arg6[%c0_20, %c0_21], %40 {strides = array<i32>} : memref<5x2xf32, #tpu.memory_space<vmem>>, vector<5x1xf32>,
    %42 = vector.extract_strided_slice %16 {offsets = [64, 0], sizes = [64, 128], strides = [1, 1]} : vector<128x128xf32> to vector<64x128xf32>
    %43 = vector.shape_cast %42 : vector<64x128xf32> to vector<1x64x128xf32>
    %44 = vector.broadcast %43 : vector<1x64x128xf32> to vector<5x64x128xf32>
    %45 = arith.mulf %17, %44 : vector<5x64x128xf32>
    %cst_22 = arith.constant dense<0.000000e+00> : vector<5x64xf32>
    %46 = vector.multi_reduction <add>, %45, %cst_22 [2] : vector<5x64x128xf32> to vector<5x64xf32>
    %cst_23 = arith.constant dense<0.000000e+00> : vector<5xf32>
    %47 = vector.multi_reduction <add>, %46, %cst_23 [1] : vector<5x64xf32> to vector<5xf32>
    %48 = vector.shape_cast %47 : vector<5xf32> to vector<5x1xf32>
    %c0_24 = arith.constant 0 : index
    %c0_25 = arith.constant 0 : index
    %49 = vector.load %arg5[%c0_24, %c0_25] : memref<5x1xf32, #tpu.memory_space<vmem>>, vector<5x1xf32>
    %50 = arith.addf %48, %49 : vector<5x1xf32>
    %cst_26 = arith.constant 0.000000e+00 : f32
    %51 = vector.broadcast %cst_26 : f32 to vector<5x1xf32>
    %52 = arith.cmpf oge, %50, %51 : vector<5x1xf32>
    %cst_27 = arith.constant 0.00999999977 : f32
    %53 = vector.broadcast %cst_27 : f32 to vector<5x1xf32>
    %54 = arith.mulf %53, %50 : vector<5x1xf32>
    %55 = arith.select %52, %50, %54 : vector<5x1xi1>, vector<5x1xf32>
    %cst_28 = arith.constant dense<0xFF800000> : vector<1xf32>
    %56 = vector.multi_reduction <maximumf>, %55, %cst_28 [0] : vector<5x1xf32> to vector<1xf32>
    %57 = vector.shape_cast %56 : vector<1xf32> to vector<1x1xf32>
    %58 = vector.broadcast %57 : vector<1x1xf32> to vector<5x1xf32>
    %59 = arith.subf %55, %58 : vector<5x1xf32>
    %60 = math.exp %59 : vector<5x1xf32>
    %cst_29 = arith.constant dense<0.000000e+00> : vector<1xf32>
    %61 = vector.multi_reduction <add>, %60, %cst_29 [0] : vector<5x1xf32> to vector<1xf32>
    %62 = vector.shape_cast %61 : vector<1xf32> to vector<1x1xf32>
    %63 = vector.broadcast %62 : vector<1x1xf32> to vector<5x1xf32>
    %64 = arith.divf %60, %63 : vector<5x1xf32>
    %c0_30 = arith.constant 0 : index
    %c1_31 = arith.constant 1 : index
    %65 = vector.load %arg6[%c0_30, %c1_31] : memref<5x2xf32, #tpu.memory_space<vmem>>, vector<5x1xf32>
    tpu.vector_store %arg6[%c0_30, %c1_31], %64 {strides = array<i32>} : memref<5x2xf32, #tpu.memory_space<vmem>>, vector<5x1xf32>,
    return
  }
  func.func @transform_0(%arg0: i32) -> (i32, i32) {
    %c0_i32 = arith.constant 0 : i32
    %c0_i32_0 = arith.constant 0 : i32
    %c0_i32_1 = arith.constant 0 : i32
    return %c0_i32, %c0_i32_0 : i32, i32
  }
  func.func @transform_1(%arg0: i32) -> (i32, i32) {
    %c0_i32 = arith.constant 0 : i32
    %c0_i32_0 = arith.constant 0 : i32
    %c0_i32_1 = arith.constant 0 : i32
    return %c0_i32, %c0_i32_0 : i32, i32
  }
  func.func @transform_2(%arg0: i32) -> (i32, i32) {
    %c0_i32 = arith.constant 0 : i32
    %c0_i32_0 = arith.constant 0 : i32
    %c0_i32_1 = arith.constant 0 : i32
    return %c0_i32, %c0_i32_0 : i32, i32
  }
  func.func @transform_3(%arg0: i32) -> (i32, i32, i32) {
    %c0_i32 = arith.constant 0 : i32
    %c0_i32_0 = arith.constant 0 : i32
    %c0_i32_1 = arith.constant 0 : i32
    %c0_i32_2 = arith.constant 0 : i32
    return %c0_i32, %c0_i32_0, %c0_i32_1 : i32, i32, i32
  }
  func.func @transform_4(%arg0: i32) -> (i32, i32) {
    %c0_i32 = arith.constant 0 : i32
    %c0_i32_0 = arith.constant 0 : i32
    %c0_i32_1 = arith.constant 0 : i32
    return %c0_i32, %c0_i32_0 : i32, i32
  }
  func.func @transform_5(%arg0: i32) -> (i32, i32) {
    %c0_i32 = arith.constant 0 : i32
    %c0_i32_0 = arith.constant 0 : i32
    %c0_i32_1 = arith.constant 0 : i32
    return %c0_i32, %c0_i32_0 : i32, i32
  }
}

</mosaic_0001>

<llo_original>
// kernel: forward.2
$region0: #{forward.2}
  #allocation0 [shape = 'u32[]', space=smem, size = 0x4, offset = 0x4, fixed_abs, tag = 'smem constant byte address 0x4 - core index']
  #allocation1 [shape = 'u32[144,128]{1,0:T(1,128)}', space=vmem, size = 0x12000, scoped, tag = 'internal scratch']
  %s0 = inlined_call_operand.vmem [shape: bf16[432,81], index: 0, kind: input, shape index: {}]
  %s1 = inlined_call_operand.vmem [shape: bf16[81,128], index: 1, kind: input, shape index: {}]
  %s2 = inlined_call_operand.vmem [shape: f32[3,128], index: 2, kind: input, shape index: {}]
  %s3 = inlined_call_operand.vmem [shape: bf16[432,128], index: 3, kind: output, shape index: {}]
  %s4 = sld [smem:[#allocation0]]
  $region22: #{forward.2} parent=0
    _
  %s6 = ssub.s32 1, %s4
  %s7 = scalar_select 0, %s6, %s4
  // Predicated region
  $region2: #{forward.2} parent=0 // pred_check
    _
  $region3: #{forward.2} parent=0 // pred_check_branch
    %9 = sbr.rel (0) target = $region5
  $region4: #{forward.2} parent=0 // pred_region
    _
  $region5: #{forward.2} parent=0 // pred_fallthru
    _
  // Predicated region
  $region6: #{forward.2} parent=0 // pred_check
    _
  $region7: #{forward.2} parent=0 // pred_check_branch
    %11 = sbr.rel (0) target = $region9
  $region8: #{forward.2} parent=0 // pred_region
    _
  $region9: #{forward.2} parent=0 // pred_fallthru
    _
  // Predicated region
  $region10: #{forward.2} parent=0 // pred_check
    _
  $region11: #{forward.2} parent=0 // pred_check_branch
    %13 = sbr.rel (0) target = $region13
  $region12: #{forward.2} parent=0 // pred_region
    _
  $region13: #{forward.2} parent=0 // pred_fallthru
    _
  %v15 = vld [vmem:[%s0] sm:$0xf]
  %v16 = vld [vmem:[%s0 + $0x4] sm:$0xf]
  %v17 = vld [vmem:[%s0 + $0x8] sm:$0xf]
  %v18 = vld [vmem:[%s0 + $0xc] sm:$0xf]
  %v19 = vld [vmem:[%s0 + $0x10] sm:$0xf]
  %v20 = vld [vmem:[%s0 + $0x14] sm:$0xf]
  %v21 = vld [vmem:[%s0 + $0x18] sm:$0xf]
  %v22 = vld [vmem:[%s0 + $0x1c] sm:$0xf]
  %v23 = vld [vmem:[%s0 + $0x20] sm:$0xf]
  %v24 = vld [vmem:[%s0 + $0x24] sm:$0xf]
  %v25 = vld [vmem:[%s0 + $0x28] sm:$0xf]
  %v26 = vld [vmem:[%s0 + $0x2c] sm:$0xf]
  %v27 = vld [vmem:[%s0 + $0x30] sm:$0xf]
  %v28 = vld [vmem:[%s0 + $0x34] sm:$0xf]
  %v29 = vld [vmem:[%s0 + $0x38] sm:$0xf]
  %v30 = vld [vmem:[%s0 + $0x3c] sm:$0xf]
  %v31 = vld [vmem:[%s0 + $0x40] sm:$0xf]
  %v32 = vld [vmem:[%s0 + $0x44] sm:$0xf]
  %v33 = vld [vmem:[%s0 + $0x48] sm:$0xf]
  %v34 = vld [vmem:[%s0 + $0x4c] sm:$0xf]
  %v35 = vld [vmem:[%s0 + $0x50] sm:$0xf]
  %v36 = vld [vmem:[%s0 + $0x54] sm:$0xf]
  %v37 = vld [vmem:[%s0 + $0x58] sm:$0xf]
  %v38 = vld [vmem:[%s0 + $0x5c] sm:$0xf]
  %v39 = vld [vmem:[%s0 + $0x60] sm:$0xf]
  %v40 = vld [vmem:[%s0 + $0x64] sm:$0xf]
  %v41 = vld [vmem:[%s0 + $0x68] sm:$0xf]
  %v42 = vld [vmem:[%s0 + $0x6c] sm:$0xf]
  %v43 = vld [vmem:[%s0 + $0x70] sm:$0xf]
  %v44 = vld [vmem:[%s0 + $0x74] sm:$0xf]
  %v45 = vld [vmem:[%s0 + $0x78] sm:$0xf]
  %v46 = vld [vmem:[%s0 + $0x7c] sm:$0xf]
  %v47 = vld [vmem:[%s0 + $0x80] sm:$0xf]
  %v48 = vld [vmem:[%s0 + $0x84] sm:$0xf]
  %v49 = vld [vmem:[%s0 + $0x88] sm:$0xf]
  %v50 = vld [vmem:[%s0 + $0x8c] sm:$0xf]
  %v51 = vld [vmem:[%s0 + $0x90] sm:$0xf]
  %v52 = vld [vmem:[%s0 + $0x94] sm:$0xf]
  %v53 = vld [vmem:[%s0 + $0x98] sm:$0xf]
  %v54 = vld [vmem:[%s0 + $0x9c] sm:$0xf]
  %v55 = vld [vmem:[%s0 + $0xa0] sm:$0xf]
  %v56 = vld [vmem:[%s0 + $0xa4] sm:$0xf]
  %v57 = vld [vmem:[%s0 + $0xa8] sm:$0xf]
  %v58 = vld [vmem:[%s0 + $0xac] sm:$0xf]
  %v59 = vld [vmem:[%s0 + $0xb0] sm:$0xf]
  %v60 = vld [vmem:[%s0 + $0xb4] sm:$0xf]
  %v61 = vld [vmem:[%s0 + $0xb8] sm:$0xf]
  %v62 = vld [vmem:[%s0 + $0xbc] sm:$0xf]
  %v63 = vld [vmem:[%s0 + $0xc0] sm:$0xf]
  %v64 = vld [vmem:[%s0 + $0xc4] sm:$0xf]
  %v65 = vld [vmem:[%s0 + $0xc8] sm:$0xf]
  %v66 = vld [vmem:[%s0 + $0xcc] sm:$0xf]
  %v67 = vld [vmem:[%s0 + $0xd0] sm:$0xf]
  %v68 = vld [vmem:[%s0 + $0xd4] sm:$0xf]
  %v69 = vld [vmem:[%s1] sm:$0xf]
  %v70 = vld [vmem:[%s1 + $0x4] sm:$0xf]
  %v71 = vld [vmem:[%s1 + $0x8] sm:$0xf]
  %v72 = vld [vmem:[%s1 + $0xc] sm:$0xf]
  %v73 = vld [vmem:[%s1 + $0x10] sm:$0xf]
  %v74 = vld [vmem:[%s1 + $0x14] sm:$0xf]
  %v75 = vld [vmem:[%s1 + $0x18] sm:$0xf]
  %v76 = vld [vmem:[%s1 + $0x1c] sm:$0xf]
  %v77 = vld [vmem:[%s1 + $0x20] sm:$0xf]
  %v78 = vld [vmem:[%s1 + $0x24] sm:$0xf]
  %v79 = vld [vmem:[%s1 + $0x28] sm:$0x1]
  %v80 = vld [vmem:[%s2] sm:$0x1]
  %v81 = vlaneseq
  %v82 = vshrl.u32 %v81, 7
  %v83 = vsub.s32 0, %v82
  %v84 = vrot.slane %v80, %v83
  %v139 = vunpack.c.l.b16 %v15
  %v140 = vunpack.c.l.b16 %v16
  %v141 = vunpack.c.l.b16 %v17
  %v142 = vunpack.c.l.b16 %v18
  %v143 = vunpack.c.l.b16 %v19
  %v144 = vunpack.c.l.b16 %v20
  %v145 = vunpack.c.l.b16 %v21
  %v146 = vunpack.c.l.b16 %v22
  %v147 = vunpack.c.l.b16 %v23
  %v148 = vunpack.c.l.b16 %v24
  %v149 = vunpack.c.l.b16 %v25
  %v150 = vunpack.c.l.b16 %v26
  %v151 = vunpack.c.l.b16 %v27
  %v152 = vunpack.c.l.b16 %v28
  %v153 = vunpack.c.l.b16 %v29
  %v154 = vunpack.c.l.b16 %v30
  %v155 = vunpack.c.l.b16 %v31
  %v156 = vunpack.c.l.b16 %v32
  %v157 = vunpack.c.l.b16 %v33
  %v158 = vunpack.c.l.b16 %v34
  %v159 = vunpack.c.l.b16 %v35
  %v160 = vunpack.c.l.b16 %v36
  %v161 = vunpack.c.l.b16 %v37
  %v162 = vunpack.c.l.b16 %v38
  %v163 = vunpack.c.l.b16 %v39
  %v164 = vunpack.c.l.b16 %v40
  %v165 = vunpack.c.l.b16 %v41
  %v166 = vunpack.c.l.b16 %v42
  %v167 = vunpack.c.l.b16 %v43
  %v168 = vunpack.c.l.b16 %v44
  %v169 = vunpack.c.l.b16 %v45
  %v170 = vunpack.c.l.b16 %v46
  %v171 = vunpack.c.l.b16 %v47
  %v172 = vunpack.c.l.b16 %v48
  %v173 = vunpack.c.l.b16 %v49
  %v174 = vunpack.c.l.b16 %v50
  %v175 = vunpack.c.l.b16 %v51
  %v176 = vunpack.c.l.b16 %v52
  %v177 = vunpack.c.l.b16 %v53
  %v178 = vunpack.c.l.b16 %v54
  %v179 = vunpack.c.l.b16 %v55
  %v180 = vunpack.c.l.b16 %v56
  %v181 = vunpack.c.l.b16 %v57
  %v182 = vunpack.c.l.b16 %v58
  %v183 = vunpack.c.l.b16 %v59
  %v184 = vunpack.c.l.b16 %v60
  %v185 = vunpack.c.l.b16 %v61
  %v186 = vunpack.c.l.b16 %v62
  %v187 = vunpack.c.l.b16 %v63
  %v188 = vunpack.c.l.b16 %v64
  %v189 = vunpack.c.l.b16 %v65
  %v190 = vunpack.c.l.b16 %v66
  %v191 = vunpack.c.l.b16 %v67
  %v192 = vunpack.c.l.b16 %v68
  %v193 = vpack.c.b16 %v140, %v139
  %v194 = vpack.c.b16 %v142, %v141
  %v195 = vpack.c.b16 %v144, %v143
  %v196 = vpack.c.b16 %v146, %v145
  %v197 = vpack.c.b16 %v148, %v147
  %v198 = vpack.c.b16 %v150, %v149
  %v199 = vpack.c.b16 %v152, %v151
  %v200 = vpack.c.b16 %v154, %v153
  %v201 = vpack.c.b16 %v156, %v155
  %v202 = vpack.c.b16 %v158, %v157
  %v203 = vpack.c.b16 %v160, %v159
  %v204 = vpack.c.b16 %v162, %v161
  %v205 = vpack.c.b16 %v164, %v163
  %v206 = vpack.c.b16 %v166, %v165
  %v207 = vpack.c.b16 %v168, %v167
  %v208 = vpack.c.b16 %v170, %v169
  %v209 = vpack.c.b16 %v172, %v171
  %v210 = vpack.c.b16 %v174, %v173
  %v211 = vpack.c.b16 %v176, %v175
  %v212 = vpack.c.b16 %v178, %v177
  %v213 = vpack.c.b16 %v180, %v179
  %v214 = vpack.c.b16 %v182, %v181
  %v215 = vpack.c.b16 %v184, %v183
  %v216 = vpack.c.b16 %v186, %v185
  %v217 = vpack.c.b16 %v188, %v187
  %v218 = vpack.c.b16 %v190, %v189
  %v219 = vpack.c.b16 %v192, %v191
  %v231 = vunpack.c.l.b16 %v69
  %v232 = vunpack.c.l.b16 %v70
  %v233 = vunpack.c.l.b16 %v71
  %v234 = vunpack.c.l.b16 %v72
  %v235 = vunpack.c.l.b16 %v73
  %v236 = vunpack.c.l.b16 %v74
  %v237 = vunpack.c.l.b16 %v75
  %v238 = vunpack.c.l.b16 %v76
  %v239 = vunpack.c.l.b16 %v77
  %v240 = vunpack.c.l.b16 %v78
  %v241 = vunpack.c.l.b16 %v79
  %v242 = vpack.c.b16 %v232, %v231
  %v243 = vpack.c.b16 %v234, %v233
  %v244 = vpack.c.b16 %v236, %v235
  %v245 = vpack.c.b16 %v238, %v237
  %v246 = vpack.c.b16 %v240, %v239
  %v247 = vpack.c.b16 %v241, %v241
  %vm253 = vcmask 662528
  %v255 = vsel %vm253, %v193, 0
  %v258 = vsel %vm253, %v194, 0
  %v261 = vsel %vm253, %v195, 0
  %v264 = vsel %vm253, %v196, 0
  %v267 = vsel %vm253, %v197, 0
  %v270 = vsel %vm253, %v198, 0
  %v273 = vsel %vm253, %v199, 0
  %v276 = vsel %vm253, %v200, 0
  %v279 = vsel %vm253, %v201, 0
  %v282 = vsel %vm253, %v202, 0
  %v285 = vsel %vm253, %v203, 0
  %v288 = vsel %vm253, %v204, 0
  %v291 = vsel %vm253, %v205, 0
  %v294 = vsel %vm253, %v206, 0
  %v297 = vsel %vm253, %v207, 0
  %v300 = vsel %vm253, %v208, 0
  %v303 = vsel %vm253, %v209, 0
  %v306 = vsel %vm253, %v210, 0
  %v309 = vsel %vm253, %v211, 0
  %v312 = vsel %vm253, %v212, 0
  %v315 = vsel %vm253, %v213, 0
  %v318 = vsel %vm253, %v214, 0
  %v321 = vsel %vm253, %v215, 0
  %v324 = vsel %vm253, %v216, 0
  %v327 = vsel %vm253, %v217, 0
  %v330 = vsel %vm253, %v218, 0
  %v333 = vsel %vm253, %v219, 0
  %vm335 = vcmask 1040384
  %v336 = vsel 0, 4294967295, 65535
  %v337 = vsel %vm335, %v336, 0
  %v339 = vand.u32 %v247, %v337
  %341 = vmatprep.subr.bf16.mxu0 0
  %342 = vmatpush1.bf16.msra.mxu0 %v242
  %343 = vmatprep.subr.bf16.mxu0 0
  %344 = vmatpush1.bf16.msra.mxu0 %v243
  %345 = vmatprep.subr.bf16.mxu0 0
  %346 = vmatpush1.bf16.msra.mxu0 %v244
  %347 = vmatprep.subr.bf16.mxu0 0
  %348 = vmatpush1.bf16.msra.mxu0 %v245
  %349 = vmatprep.subr.bf16.mxu0 0
  %350 = vmatpush1.bf16.msra.mxu0 %v246
  %351 = vmatprep.subr.bf16.mxu0 0
  %352 = vmatpush1.bf16.msra.mxu0 %v339
  %353 = vmatprep.subr.bf16.mxu0 0
  %354 = vmatpush1.bf16.msra.mxu0 0
  %355 = vmatprep.subr.bf16.mxu0 0
  %356 = vmatpush1.bf16.msra.mxu0 0
  %357 = vmatprep.subr.bf16.mxu0 0
  %358 = vmatpush1.bf16.msra.mxu0 0
  %359 = vmatprep.subr.bf16.mxu0 0
  %360 = vmatpush1.bf16.msra.mxu0 0
  %361 = vmatprep.subr.bf16.mxu0 0
  %362 = vmatpush1.bf16.msra.mxu0 0
  %363 = vmatprep.subr.bf16.mxu0 0
  %364 = vmatpush1.bf16.msra.mxu0 0
  %365 = vmatprep.subr.bf16.mxu0 0
  %366 = vmatpush1.bf16.msra.mxu0 0
  %367 = vmatprep.subr.bf16.mxu0 0
  %368 = vmatpush1.bf16.msra.mxu0 0
  %369 = vmatprep.subr.bf16.mxu0 0
  %370 = vmatpush1.bf16.msra.mxu0 0
  %371 = vmatprep.subr.bf16.mxu0 0
  %372 = vmatpush1.bf16.msra.mxu0 0
  %373 = vmatprep.mubr.bf16.mxu0 0
  %374 = vmatmul.mubr.bf16.gmra.mrb[0].mxu0 %v255
  %v375 = vpop.f32.mrb[0].mxu0
  %v376 = vadd.f32 %v84, %v375
  %v377 = vpop.f32.mrb[0].mxu0
  %v378 = vpop.f32.mrb[0].mxu0
  %v379 = vadd.f32 %v84, %v378
  %v380 = vpop.f32.mrb[0].mxu0
  %381 = vmatprep.mubr.bf16.mxu0 0
  %382 = vmatmul.mubr.bf16.gmra.mrb[0].mxu0 %v258
  %v383 = vpop.f32.mrb[0].mxu0
  %v384 = vadd.f32 %v84, %v383
  %v385 = vpop.f32.mrb[0].mxu0
  %v386 = vpop.f32.mrb[0].mxu0
  %v387 = vadd.f32 %v84, %v386
  %v388 = vpop.f32.mrb[0].mxu0
  %389 = vmatprep.mubr.bf16.mxu0 0
  %390 = vmatmul.mubr.bf16.gmra.mrb[0].mxu0 %v261
  %v391 = vpop.f32.mrb[0].mxu0
  %v392 = vadd.f32 %v84, %v391
  %v393 = vpop.f32.mrb[0].mxu0
  %v394 = vpop.f32.mrb[0].mxu0
  %v395 = vadd.f32 %v84, %v394
  %v396 = vpop.f32.mrb[0].mxu0
  %397 = vmatprep.mubr.bf16.mxu0 0
  %398 = vmatmul.mubr.bf16.gmra.mrb[0].mxu0 %v264
  %v399 = vpop.f32.mrb[0].mxu0
  %v400 = vadd.f32 %v84, %v399
  %v401 = vpop.f32.mrb[0].mxu0
  %v402 = vpop.f32.mrb[0].mxu0
  %v403 = vadd.f32 %v84, %v402
  %v404 = vpop.f32.mrb[0].mxu0
  %405 = vmatprep.mubr.bf16.mxu0 0
  %406 = vmatmul.mubr.bf16.gmra.mrb[0].mxu0 %v267
  %v407 = vpop.f32.mrb[0].mxu0
  %v408 = vadd.f32 %v84, %v407
  %v409 = vpop.f32.mrb[0].mxu0
  %v410 = vpop.f32.mrb[0].mxu0
  %v411 = vadd.f32 %v84, %v410
  %v412 = vpop.f32.mrb[0].mxu0
  %413 = vmatprep.mubr.bf16.mxu0 0
  %414 = vmatmul.mubr.bf16.gmra.mrb[0].mxu0 %v270
  %v415 = vpop.f32.mrb[0].mxu0
  %v416 = vadd.f32 %v84, %v415
  %v417 = vpop.f32.mrb[0].mxu0
  %v418 = vpop.f32.mrb[0].mxu0
  %v419 = vadd.f32 %v84, %v418
  %v420 = vpop.f32.mrb[0].mxu0
  %421 = vmatprep.mubr.bf16.mxu0 0
  %422 = vmatmul.mubr.bf16.gmra.mrb[0].mxu0 %v273
  %v423 = vpop.f32.mrb[0].mxu0
  %v424 = vadd.f32 %v84, %v423
  %v425 = vpop.f32.mrb[0].mxu0
  %v426 = vpop.f32.mrb[0].mxu0
  %v427 = vadd.f32 %v84, %v426
  %v428 = vpop.f32.mrb[0].mxu0
  %429 = vmatprep.mubr.bf16.mxu0 0
  %430 = vmatmul.mubr.bf16.gmra.mrb[0].mxu0 %v276
  %v431 = vpop.f32.mrb[0].mxu0
  %v432 = vadd.f32 %v84, %v431
  %v433 = vpop.f32.mrb[0].mxu0
  %v434 = vpop.f32.mrb[0].mxu0
  %v435 = vadd.f32 %v84, %v434
  %v436 = vpop.f32.mrb[0].mxu0
  %437 = vmatprep.mubr.bf16.mxu0 0
  %438 = vmatmul.mubr.bf16.gmra.mrb[0].mxu0 %v279
  %v439 = vpop.f32.mrb[0].mxu0
  %v440 = vadd.f32 %v84, %v439
  %v441 = vpop.f32.mrb[0].mxu0
  %v442 = vpop.f32.mrb[0].mxu0
  %v443 = vadd.f32 %v84, %v442
  %v444 = vpop.f32.mrb[0].mxu0
  %445 = vmatprep.mubr.bf16.mxu0 0
  %446 = vmatmul.mubr.bf16.gmra.mrb[0].mxu0 %v282
  %v447 = vpop.f32.mrb[0].mxu0
  %v448 = vadd.f32 %v84, %v447
  %v449 = vpop.f32.mrb[0].mxu0
  %v450 = vpop.f32.mrb[0].mxu0
  %v451 = vadd.f32 %v84, %v450
  %v452 = vpop.f32.mrb[0].mxu0
  %453 = vmatprep.mubr.bf16.mxu0 0
  %454 = vmatmul.mubr.bf16.gmra.mrb[0].mxu0 %v285
  %v455 = vpop.f32.mrb[0].mxu0
  %v456 = vadd.f32 %v84, %v455
  %v457 = vpop.f32.mrb[0].mxu0
  %v458 = vpop.f32.mrb[0].mxu0
  %v459 = vadd.f32 %v84, %v458
  %v460 = vpop.f32.mrb[0].mxu0
  %461 = vmatprep.mubr.bf16.mxu0 0
  %462 = vmatmul.mubr.bf16.gmra.mrb[0].mxu0 %v288
  %v463 = vpop.f32.mrb[0].mxu0
  %v464 = vadd.f32 %v84, %v463
  %v465 = vpop.f32.mrb[0].mxu0
  %v466 = vpop.f32.mrb[0].mxu0
  %v467 = vadd.f32 %v84, %v466
  %v468 = vpop.f32.mrb[0].mxu0
  %469 = vmatprep.mubr.bf16.mxu0 0
  %470 = vmatmul.mubr.bf16.gmra.mrb[0].mxu0 %v291
  %v471 = vpop.f32.mrb[0].mxu0
  %v472 = vadd.f32 %v84, %v471
  %v473 = vpop.f32.mrb[0].mxu0
  %v474 = vpop.f32.mrb[0].mxu0
  %v475 = vadd.f32 %v84, %v474
  %v476 = vpop.f32.mrb[0].mxu0
  %477 = vmatprep.mubr.bf16.mxu0 0
  %478 = vmatmul.mubr.bf16.gmra.mrb[0].mxu0 %v294
  %v479 = vpop.f32.mrb[0].mxu0
  %v480 = vadd.f32 %v84, %v479
  %v481 = vpop.f32.mrb[0].mxu0
  %v482 = vpop.f32.mrb[0].mxu0
  %v483 = vadd.f32 %v84, %v482
  %v484 = vpop.f32.mrb[0].mxu0
  %485 = vmatprep.mubr.bf16.mxu0 0
  %486 = vmatmul.mubr.bf16.gmra.mrb[0].mxu0 %v297
  %v487 = vpop.f32.mrb[0].mxu0
  %v488 = vadd.f32 %v84, %v487
  %v489 = vpop.f32.mrb[0].mxu0
  %v490 = vpop.f32.mrb[0].mxu0
  %v491 = vadd.f32 %v84, %v490
  %v492 = vpop.f32.mrb[0].mxu0
  %493 = vmatprep.mubr.bf16.mxu0 0
  %494 = vmatmul.mubr.bf16.gmra.mrb[0].mxu0 %v300
  %v495 = vpop.f32.mrb[0].mxu0
  %v496 = vadd.f32 %v84, %v495
  %v497 = vpop.f32.mrb[0].mxu0
  %v498 = vpop.f32.mrb[0].mxu0
  %v499 = vadd.f32 %v84, %v498
  %v500 = vpop.f32.mrb[0].mxu0
  %501 = vmatprep.mubr.bf16.mxu0 0
  %502 = vmatmul.mubr.bf16.gmra.mrb[0].mxu0 %v303
  %v503 = vpop.f32.mrb[0].mxu0
  %v504 = vadd.f32 %v84, %v503
  %v505 = vpop.f32.mrb[0].mxu0
  %v506 = vpop.f32.mrb[0].mxu0
  %v507 = vadd.f32 %v84, %v506
  %v508 = vpop.f32.mrb[0].mxu0
  %509 = vmatprep.mubr.bf16.mxu0 0
  %510 = vmatmul.mubr.bf16.gmra.mrb[0].mxu0 %v306
  %v511 = vpop.f32.mrb[0].mxu0
  %v512 = vadd.f32 %v84, %v511
  %v513 = vpop.f32.mrb[0].mxu0
  %v514 = vpop.f32.mrb[0].mxu0
  %v515 = vadd.f32 %v84, %v514
  %v516 = vpop.f32.mrb[0].mxu0
  %517 = vmatprep.mubr.bf16.mxu0 0
  %518 = vmatmul.mubr.bf16.gmra.mrb[0].mxu0 %v309
  %v519 = vpop.f32.mrb[0].mxu0
  %v520 = vadd.f32 %v84, %v519
  %v521 = vpop.f32.mrb[0].mxu0
  %v522 = vpop.f32.mrb[0].mxu0
  %v523 = vadd.f32 %v84, %v522
  %v524 = vpop.f32.mrb[0].mxu0
  %525 = vmatprep.mubr.bf16.mxu0 0
  %526 = vmatmul.mubr.bf16.gmra.mrb[0].mxu0 %v312
  %v527 = vpop.f32.mrb[0].mxu0
  %v528 = vadd.f32 %v84, %v527
  %v529 = vpop.f32.mrb[0].mxu0
  %v530 = vpop.f32.mrb[0].mxu0
  %v531 = vadd.f32 %v84, %v530
  %v532 = vpop.f32.mrb[0].mxu0
  %533 = vmatprep.mubr.bf16.mxu0 0
  %534 = vmatmul.mubr.bf16.gmra.mrb[0].mxu0 %v315
  %v535 = vpop.f32.mrb[0].mxu0
  %v536 = vadd.f32 %v84, %v535
  %v537 = vpop.f32.mrb[0].mxu0
  %v538 = vpop.f32.mrb[0].mxu0
  %v539 = vadd.f32 %v84, %v538
  %v540 = vpop.f32.mrb[0].mxu0
  %541 = vmatprep.mubr.bf16.mxu0 0
  %542 = vmatmul.mubr.bf16.gmra.mrb[0].mxu0 %v318
  %v543 = vpop.f32.mrb[0].mxu0
  %v544 = vadd.f32 %v84, %v543
  %v545 = vpop.f32.mrb[0].mxu0
  %v546 = vpop.f32.mrb[0].mxu0
  %v547 = vadd.f32 %v84, %v546
  %v548 = vpop.f32.mrb[0].mxu0
  %549 = vmatprep.mubr.bf16.mxu0 0
  %550 = vmatmul.mubr.bf16.gmra.mrb[0].mxu0 %v321
  %v551 = vpop.f32.mrb[0].mxu0
  %v552 = vadd.f32 %v84, %v551
  %v553 = vpop.f32.mrb[0].mxu0
  %v554 = vpop.f32.mrb[0].mxu0
  %v555 = vadd.f32 %v84, %v554
  %v556 = vpop.f32.mrb[0].mxu0
  %557 = vmatprep.mubr.bf16.mxu0 0
  %558 = vmatmul.mubr.bf16.gmra.mrb[0].mxu0 %v324
  %v559 = vpop.f32.mrb[0].mxu0
  %v560 = vadd.f32 %v84, %v559
  %v561 = vpop.f32.mrb[0].mxu0
  %v562 = vpop.f32.mrb[0].mxu0
  %v563 = vadd.f32 %v84, %v562
  %v564 = vpop.f32.mrb[0].mxu0
  %565 = vmatprep.mubr.bf16.mxu0 0
  %566 = vmatmul.mubr.bf16.gmra.mrb[0].mxu0 %v327
  %v567 = vpop.f32.mrb[0].mxu0
  %v568 = vadd.f32 %v84, %v567
  %v569 = vpop.f32.mrb[0].mxu0
  %v570 = vpop.f32.mrb[0].mxu0
  %v571 = vadd.f32 %v84, %v570
  %v572 = vpop.f32.mrb[0].mxu0
  %573 = vmatprep.mubr.bf16.mxu0 0
  %574 = vmatmul.mubr.bf16.gmra.mrb[0].mxu0 %v330
  %v575 = vpop.f32.mrb[0].mxu0
  %v576 = vadd.f32 %v84, %v575
  %v577 = vpop.f32.mrb[0].mxu0
  %v578 = vpop.f32.mrb[0].mxu0
  %v579 = vadd.f32 %v84, %v578
  %v580 = vpop.f32.mrb[0].mxu0
  %581 = vmatprep.mubr.bf16.mxu0 0
  %582 = vmatmul.mubr.bf16.gmra.mrb[0].mxu0 %v333
  %v583 = vpop.f32.mrb[0].mxu0
  %v584 = vadd.f32 %v84, %v583
  %v585 = vpop.f32.mrb[0].mxu0
  %v586 = vpop.f32.mrb[0].mxu0
  %v587 = vadd.f32 %v84, %v586
  %v588 = vpop.f32.mrb[0].mxu0
  %589 = vdwg.mxu0
  %vm590 = vcmp.ge.f32.partialorder %v376, 0.0
  %vm591 = vcmp.ge.f32.partialorder %v379, 0.0
  %vm592 = vcmp.ge.f32.partialorder %v384, 0.0
  %vm593 = vcmp.ge.f32.partialorder %v387, 0.0
  %vm594 = vcmp.ge.f32.partialorder %v392, 0.0
  %vm595 = vcmp.ge.f32.partialorder %v395, 0.0
  %vm596 = vcmp.ge.f32.partialorder %v400, 0.0
  %vm597 = vcmp.ge.f32.partialorder %v403, 0.0
  %vm598 = vcmp.ge.f32.partialorder %v408, 0.0
  %vm599 = vcmp.ge.f32.partialorder %v411, 0.0
  %vm600 = vcmp.ge.f32.partialorder %v416, 0.0
  %vm601 = vcmp.ge.f32.partialorder %v419, 0.0
  %vm602 = vcmp.ge.f32.partialorder %v424, 0.0
  %vm603 = vcmp.ge.f32.partialorder %v427, 0.0
  %vm604 = vcmp.ge.f32.partialorder %v432, 0.0
  %vm605 = vcmp.ge.f32.partialorder %v435, 0.0
  %vm606 = vcmp.ge.f32.partialorder %v440, 0.0
  %vm607 = vcmp.ge.f32.partialorder %v443, 0.0
  %vm608 = vcmp.ge.f32.partialorder %v448, 0.0
  %vm609 = vcmp.ge.f32.partialorder %v451, 0.0
  %vm610 = vcmp.ge.f32.partialorder %v456, 0.0
  %vm611 = vcmp.ge.f32.partialorder %v459, 0.0
  %vm612 = vcmp.ge.f32.partialorder %v464, 0.0
  %vm613 = vcmp.ge.f32.partialorder %v467, 0.0
  %vm614 = vcmp.ge.f32.partialorder %v472, 0.0
  %vm615 = vcmp.ge.f32.partialorder %v475, 0.0
  %vm616 = vcmp.ge.f32.partialorder %v480, 0.0
  %vm617 = vcmp.ge.f32.partialorder %v483, 0.0
  %vm618 = vcmp.ge.f32.partialorder %v488, 0.0
  %vm619 = vcmp.ge.f32.partialorder %v491, 0.0
  %vm620 = vcmp.ge.f32.partialorder %v496, 0.0
  %vm621 = vcmp.ge.f32.partialorder %v499, 0.0
  %vm622 = vcmp.ge.f32.partialorder %v504, 0.0
  %vm623 = vcmp.ge.f32.partialorder %v507, 0.0
  %vm624 = vcmp.ge.f32.partialorder %v512, 0.0
  %vm625 = vcmp.ge.f32.partialorder %v515, 0.0
  %vm626 = vcmp.ge.f32.partialorder %v520, 0.0
  %vm627 = vcmp.ge.f32.partialorder %v523, 0.0
  %vm628 = vcmp.ge.f32.partialorder %v528, 0.0
  %vm629 = vcmp.ge.f32.partialorder %v531, 0.0
  %vm630 = vcmp.ge.f32.partialorder %v536, 0.0
  %vm631 = vcmp.ge.f32.partialorder %v539, 0.0
  %vm632 = vcmp.ge.f32.partialorder %v544, 0.0
  %vm633 = vcmp.ge.f32.partialorder %v547, 0.0
  %vm634 = vcmp.ge.f32.partialorder %v552, 0.0
  %vm635 = vcmp.ge.f32.partialorder %v555, 0.0
  %vm636 = vcmp.ge.f32.partialorder %v560, 0.0
  %vm637 = vcmp.ge.f32.partialorder %v563, 0.0
  %vm638 = vcmp.ge.f32.partialorder %v568, 0.0
  %vm639 = vcmp.ge.f32.partialorder %v571, 0.0
  %vm640 = vcmp.ge.f32.partialorder %v576, 0.0
  %vm641 = vcmp.ge.f32.partialorder %v579, 0.0
  %vm642 = vcmp.ge.f32.partialorder %v584, 0.0
  %vm643 = vcmp.ge.f32.partialorder %v587, 0.0
  %v644 = vmul.f32 %v376, 0.01
  %v645 = vmul.f32 %v379, 0.01
  %v646 = vmul.f32 %v384, 0.01
  %v647 = vmul.f32 %v387, 0.01
  %v648 = vmul.f32 %v392, 0.01
  %v649 = vmul.f32 %v395, 0.01
  %v650 = vmul.f32 %v400, 0.01
  %v651 = vmul.f32 %v403, 0.01
  %v652 = vmul.f32 %v408, 0.01
  %v653 = vmul.f32 %v411, 0.01
  %v654 = vmul.f32 %v416, 0.01
  %v655 = vmul.f32 %v419, 0.01
  %v656 = vmul.f32 %v424, 0.01
  %v657 = vmul.f32 %v427, 0.01
  %v658 = vmul.f32 %v432, 0.01
  %v659 = vmul.f32 %v435, 0.01
  %v660 = vmul.f32 %v440, 0.01
  %v661 = vmul.f32 %v443, 0.01
  %v662 = vmul.f32 %v448, 0.01
  %v663 = vmul.f32 %v451, 0.01
  %v664 = vmul.f32 %v456, 0.01
  %v665 = vmul.f32 %v459, 0.01
  %v666 = vmul.f32 %v464, 0.01
  %v667 = vmul.f32 %v467, 0.01
  %v668 = vmul.f32 %v472, 0.01
  %v669 = vmul.f32 %v475, 0.01
  %v670 = vmul.f32 %v480, 0.01
  %v671 = vmul.f32 %v483, 0.01
  %v672 = vmul.f32 %v488, 0.01
  %v673 = vmul.f32 %v491, 0.01
  %v674 = vmul.f32 %v496, 0.01
  %v675 = vmul.f32 %v499, 0.01
  %v676 = vmul.f32 %v504, 0.01
  %v677 = vmul.f32 %v507, 0.01
  %v678 = vmul.f32 %v512, 0.01
  %v679 = vmul.f32 %v515, 0.01
  %v680 = vmul.f32 %v520, 0.01
  %v681 = vmul.f32 %v523, 0.01
  %v682 = vmul.f32 %v528, 0.01
  %v683 = vmul.f32 %v531, 0.01
  %v684 = vmul.f32 %v536, 0.01
  %v685 = vmul.f32 %v539, 0.01
  %v686 = vmul.f32 %v544, 0.01
  %v687 = vmul.f32 %v547, 0.01
  %v688 = vmul.f32 %v552, 0.01
  %v689 = vmul.f32 %v555, 0.01
  %v690 = vmul.f32 %v560, 0.01
  %v691 = vmul.f32 %v563, 0.01
  %v692 = vmul.f32 %v568, 0.01
  %v693 = vmul.f32 %v571, 0.01
  %v694 = vmul.f32 %v576, 0.01
  %v695 = vmul.f32 %v579, 0.01
  %v696 = vmul.f32 %v584, 0.01
  %v697 = vmul.f32 %v587, 0.01
  %v698 = vsel %vm590, %v376, %v644
  %v699 = vsel %vm591, %v379, %v645
  %v700 = vsel %vm592, %v384, %v646
  %v701 = vsel %vm593, %v387, %v647
  %v702 = vsel %vm594, %v392, %v648
  %v703 = vsel %vm595, %v395, %v649
  %v704 = vsel %vm596, %v400, %v650
  %v705 = vsel %vm597, %v403, %v651
  %v706 = vsel %vm598, %v408, %v652
  %v707 = vsel %vm599, %v411, %v653
  %v708 = vsel %vm600, %v416, %v654
  %v709 = vsel %vm601, %v419, %v655
  %v710 = vsel %vm602, %v424, %v656
  %v711 = vsel %vm603, %v427, %v657
  %v712 = vsel %vm604, %v432, %v658
  %v713 = vsel %vm605, %v435, %v659
  %v714 = vsel %vm606, %v440, %v660
  %v715 = vsel %vm607, %v443, %v661
  %v716 = vsel %vm608, %v448, %v662
  %v717 = vsel %vm609, %v451, %v663
  %v718 = vsel %vm610, %v456, %v664
  %v719 = vsel %vm611, %v459, %v665
  %v720 = vsel %vm612, %v464, %v666
  %v721 = vsel %vm613, %v467, %v667
  %v722 = vsel %vm614, %v472, %v668
  %v723 = vsel %vm615, %v475, %v669
  %v724 = vsel %vm616, %v480, %v670
  %v725 = vsel %vm617, %v483, %v671
  %v726 = vsel %vm618, %v488, %v672
  %v727 = vsel %vm619, %v491, %v673
  %v728 = vsel %vm620, %v496, %v674
  %v729 = vsel %vm621, %v499, %v675
  %v730 = vsel %vm622, %v504, %v676
  %v731 = vsel %vm623, %v507, %v677
  %v732 = vsel %vm624, %v512, %v678
  %v733 = vsel %vm625, %v515, %v679
  %v734 = vsel %vm626, %v520, %v680
  %v735 = vsel %vm627, %v523, %v681
  %v736 = vsel %vm628, %v528, %v682
  %v737 = vsel %vm629, %v531, %v683
  %v738 = vsel %vm630, %v536, %v684
  %v739 = vsel %vm631, %v539, %v685
  %v740 = vsel %vm632, %v544, %v686
  %v741 = vsel %vm633, %v547, %v687
  %v742 = vsel %vm634, %v552, %v688
  %v743 = vsel %vm635, %v555, %v689
  %v744 = vsel %vm636, %v560, %v690
  %v745 = vsel %vm637, %v563, %v691
  %v746 = vsel %vm638, %v568, %v692
  %v747 = vsel %vm639, %v571, %v693
  %v748 = vsel %vm640, %v576, %v694
  %v749 = vsel %vm641, %v579, %v695
  %v750 = vsel %vm642, %v584, %v696
  %v751 = vsel %vm643, %v587, %v697
  %v752 = vld [vmem:[%s2 + $0x1] sm:$0x1]
  %v753 = vlaneseq
  %v754 = vshrl.u32 %v753, 7
  %v755 = vsub.s32 0, %v754
  %v756 = vrot.slane %v752, %v755
  %v757 = vmul.f32 %v698, %v756
  %v758 = vmul.f32 %v699, %v756
  %v759 = vmul.f32 %v700, %v756
  %v760 = vmul.f32 %v701, %v756
  %v761 = vmul.f32 %v702, %v756
  %v762 = vmul.f32 %v703, %v756
  %v763 = vmul.f32 %v704, %v756
  %v764 = vmul.f32 %v705, %v756
  %v765 = vmul.f32 %v706, %v756
  %v766 = vmul.f32 %v707, %v756
  %v767 = vmul.f32 %v708, %v756
  %v768 = vmul.f32 %v709, %v756
  %v769 = vmul.f32 %v710, %v756
  %v770 = vmul.f32 %v711, %v756
  %v771 = vmul.f32 %v712, %v756
  %v772 = vmul.f32 %v713, %v756
  %v773 = vmul.f32 %v714, %v756
  %v774 = vmul.f32 %v715, %v756
  %v775 = vmul.f32 %v716, %v756
  %v776 = vmul.f32 %v717, %v756
  %v777 = vmul.f32 %v718, %v756
  %v778 = vmul.f32 %v719, %v756
  %v779 = vmul.f32 %v720, %v756
  %v780 = vmul.f32 %v721, %v756
  %v781 = vmul.f32 %v722, %v756
  %v782 = vmul.f32 %v723, %v756
  %v783 = vmul.f32 %v724, %v756
  %v784 = vmul.f32 %v725, %v756
  %v785 = vmul.f32 %v726, %v756
  %v786 = vmul.f32 %v727, %v756
  %v787 = vmul.f32 %v728, %v756
  %v788 = vmul.f32 %v729, %v756
  %v789 = vmul.f32 %v730, %v756
  %v790 = vmul.f32 %v731, %v756
  %v791 = vmul.f32 %v732, %v756
  %v792 = vmul.f32 %v733, %v756
  %v793 = vmul.f32 %v734, %v756
  %v794 = vmul.f32 %v735, %v756
  %v795 = vmul.f32 %v736, %v756
  %v796 = vmul.f32 %v737, %v756
  %v797 = vmul.f32 %v738, %v756
  %v798 = vmul.f32 %v739, %v756
  %v799 = vmul.f32 %v740, %v756
  %v800 = vmul.f32 %v741, %v756
  %v801 = vmul.f32 %v742, %v756
  %v802 = vmul.f32 %v743, %v756
  %v803 = vmul.f32 %v744, %v756
  %v804 = vmul.f32 %v745, %v756
  %v805 = vmul.f32 %v746, %v756
  %v806 = vmul.f32 %v747, %v756
  %v807 = vmul.f32 %v748, %v756
  %v808 = vmul.f32 %v749, %v756
  %v809 = vmul.f32 %v750, %v756
  %v810 = vmul.f32 %v751, %v756
  %v811 = vld [vmem:[%s2 + $0x2] sm:$0x1]
  %v812 = vlaneseq
  %v813 = vshrl.u32 %v812, 7
  %v814 = vsub.s32 0, %v813
  %v815 = vrot.slane %v811, %v814
  %v816 = vadd.f32 %v757, %v815
  %v817 = vadd.f32 %v758, %v815
  %v818 = vadd.f32 %v759, %v815
  %v819 = vadd.f32 %v760, %v815
  %v820 = vadd.f32 %v761, %v815
  %v821 = vadd.f32 %v762, %v815
  %v822 = vadd.f32 %v763, %v815
  %v823 = vadd.f32 %v764, %v815
  %v824 = vadd.f32 %v765, %v815
  %v825 = vadd.f32 %v766, %v815
  %v826 = vadd.f32 %v767, %v815
  %v827 = vadd.f32 %v768, %v815
  %v828 = vadd.f32 %v769, %v815
  %v829 = vadd.f32 %v770, %v815
  %v830 = vadd.f32 %v771, %v815
  %v831 = vadd.f32 %v772, %v815
  %v832 = vadd.f32 %v773, %v815
  %v833 = vadd.f32 %v774, %v815
  %v834 = vadd.f32 %v775, %v815
  %v835 = vadd.f32 %v776, %v815
  %v836 = vadd.f32 %v777, %v815
  %v837 = vadd.f32 %v778, %v815
  %v838 = vadd.f32 %v779, %v815
  %v839 = vadd.f32 %v780, %v815
  %v840 = vadd.f32 %v781, %v815
  %v841 = vadd.f32 %v782, %v815
  %v842 = vadd.f32 %v783, %v815
  %v843 = vadd.f32 %v784, %v815
  %v844 = vadd.f32 %v785, %v815
  %v845 = vadd.f32 %v786, %v815
  %v846 = vadd.f32 %v787, %v815
  %v847 = vadd.f32 %v788, %v815
  %v848 = vadd.f32 %v789, %v815
  %v849 = vadd.f32 %v790, %v815
  %v850 = vadd.f32 %v791, %v815
  %v851 = vadd.f32 %v792, %v815
  %v852 = vadd.f32 %v793, %v815
  %v853 = vadd.f32 %v794, %v815
  %v854 = vadd.f32 %v795, %v815
  %v855 = vadd.f32 %v796, %v815
  %v856 = vadd.f32 %v797, %v815
  %v857 = vadd.f32 %v798, %v815
  %v858 = vadd.f32 %v799, %v815
  %v859 = vadd.f32 %v800, %v815
  %v860 = vadd.f32 %v801, %v815
  %v861 = vadd.f32 %v802, %v815
  %v862 = vadd.f32 %v803, %v815
  %v863 = vadd.f32 %v804, %v815
  %v864 = vadd.f32 %v805, %v815
  %v865 = vadd.f32 %v806, %v815
  %v866 = vadd.f32 %v807, %v815
  %v867 = vadd.f32 %v808, %v815
  %v868 = vadd.f32 %v809, %v815
  %v869 = vadd.f32 %v810, %v815
  %v870 = vpack.c.bf16 %v817, %v816
  %v871 = vpack.c.bf16 %v819, %v818
  %v872 = vpack.c.bf16 %v821, %v820
  %v873 = vpack.c.bf16 %v823, %v822
  %v874 = vpack.c.bf16 %v825, %v824
  %v875 = vpack.c.bf16 %v827, %v826
  %v876 = vpack.c.bf16 %v829, %v828
  %v877 = vpack.c.bf16 %v831, %v830
  %v878 = vpack.c.bf16 %v833, %v832
  %v879 = vpack.c.bf16 %v835, %v834
  %v880 = vpack.c.bf16 %v837, %v836
  %v881 = vpack.c.bf16 %v839, %v838
  %v882 = vpack.c.bf16 %v841, %v840
  %v883 = vpack.c.bf16 %v843, %v842
  %v884 = vpack.c.bf16 %v845, %v844
  %v885 = vpack.c.bf16 %v847, %v846
  %v886 = vpack.c.bf16 %v849, %v848
  %v887 = vpack.c.bf16 %v851, %v850
  %v888 = vpack.c.bf16 %v853, %v852
  %v889 = vpack.c.bf16 %v855, %v854
  %v890 = vpack.c.bf16 %v857, %v856
  %v891 = vpack.c.bf16 %v859, %v858
  %v892 = vpack.c.bf16 %v861, %v860
  %v893 = vpack.c.bf16 %v863, %v862
  %v894 = vpack.c.bf16 %v865, %v864
  %v895 = vpack.c.bf16 %v867, %v866
  %v896 = vpack.c.bf16 %v869, %v868
  %v924 = vunpack.c.l.b16 %v870
  %v925 = vunpack.c.h.b16 %v870
  %v926 = vunpack.c.l.b16 %v871
  %v927 = vunpack.c.h.b16 %v871
  %v928 = vunpack.c.l.b16 %v872
  %v929 = vunpack.c.h.b16 %v872
  %v930 = vunpack.c.l.b16 %v873
  %v931 = vunpack.c.h.b16 %v873
  %v932 = vunpack.c.l.b16 %v874
  %v933 = vunpack.c.h.b16 %v874
  %v934 = vunpack.c.l.b16 %v875
  %v935 = vunpack.c.h.b16 %v875
  %v936 = vunpack.c.l.b16 %v876
  %v937 = vunpack.c.h.b16 %v876
  %v938 = vunpack.c.l.b16 %v877
  %v939 = vunpack.c.h.b16 %v877
  %v940 = vunpack.c.l.b16 %v878
  %v941 = vunpack.c.h.b16 %v878
  %v942 = vunpack.c.l.b16 %v879
  %v943 = vunpack.c.h.b16 %v879
  %v944 = vunpack.c.l.b16 %v880
  %v945 = vunpack.c.h.b16 %v880
  %v946 = vunpack.c.l.b16 %v881
  %v947 = vunpack.c.h.b16 %v881
  %v948 = vunpack.c.l.b16 %v882
  %v949 = vunpack.c.h.b16 %v882
  %v950 = vunpack.c.l.b16 %v883
  %v951 = vunpack.c.h.b16 %v883
  %v952 = vunpack.c.l.b16 %v884
  %v953 = vunpack.c.h.b16 %v884
  %v954 = vunpack.c.l.b16 %v885
  %v955 = vunpack.c.h.b16 %v885
  %v956 = vunpack.c.l.b16 %v886
  %v957 = vunpack.c.h.b16 %v886
  %v958 = vunpack.c.l.b16 %v887
  %v959 = vunpack.c.h.b16 %v887
  %v960 = vunpack.c.l.b16 %v888
  %v961 = vunpack.c.h.b16 %v888
  %v962 = vunpack.c.l.b16 %v889
  %v963 = vunpack.c.h.b16 %v889
  %v964 = vunpack.c.l.b16 %v890
  %v965 = vunpack.c.h.b16 %v890
  %v966 = vunpack.c.l.b16 %v891
  %v967 = vunpack.c.h.b16 %v891
  %v968 = vunpack.c.l.b16 %v892
  %v969 = vunpack.c.h.b16 %v892
  %v970 = vunpack.c.l.b16 %v893
  %v971 = vunpack.c.h.b16 %v893
  %v972 = vunpack.c.l.b16 %v894
  %v973 = vunpack.c.h.b16 %v894
  %v974 = vunpack.c.l.b16 %v895
  %v975 = vunpack.c.h.b16 %v895
  %v976 = vunpack.c.l.b16 %v896
  %v977 = vunpack.c.h.b16 %v896
  %v978 = vpack.c.b16 %v924, %v924
  %v979 = vpack.c.b16 %v925, %v925
  %v980 = vpack.c.b16 %v926, %v926
  %v981 = vpack.c.b16 %v927, %v927
  %v982 = vpack.c.b16 %v928, %v928
  %v983 = vpack.c.b16 %v929, %v929
  %v984 = vpack.c.b16 %v930, %v930
  %v985 = vpack.c.b16 %v931, %v931
  %v986 = vpack.c.b16 %v932, %v932
  %v987 = vpack.c.b16 %v933, %v933
  %v988 = vpack.c.b16 %v934, %v934
  %v989 = vpack.c.b16 %v935, %v935
  %v990 = vpack.c.b16 %v936, %v936
  %v991 = vpack.c.b16 %v937, %v937
  %v992 = vpack.c.b16 %v938, %v938
  %v993 = vpack.c.b16 %v939, %v939
  %v994 = vpack.c.b16 %v940, %v940
  %v995 = vpack.c.b16 %v941, %v941
  %v996 = vpack.c.b16 %v942, %v942
  %v997 = vpack.c.b16 %v943, %v943
  %v998 = vpack.c.b16 %v944, %v944
  %v999 = vpack.c.b16 %v945, %v945
  %v1000 = vpack.c.b16 %v946, %v946
  %v1001 = vpack.c.b16 %v947, %v947
  %v1002 = vpack.c.b16 %v948, %v948
  %v1003 = vpack.c.b16 %v949, %v949
  %v1004 = vpack.c.b16 %v950, %v950
  %v1005 = vpack.c.b16 %v951, %v951
  %v1006 = vpack.c.b16 %v952, %v952
  %v1007 = vpack.c.b16 %v953, %v953
  %v1008 = vpack.c.b16 %v954, %v954
  %v1009 = vpack.c.b16 %v955, %v955
  %v1010 = vpack.c.b16 %v956, %v956
  %v1011 = vpack.c.b16 %v957, %v957
  %v1012 = vpack.c.b16 %v958, %v958
  %v1013 = vpack.c.b16 %v959, %v959
  %v1014 = vpack.c.b16 %v960, %v960
  %v1015 = vpack.c.b16 %v961, %v961
  %v1016 = vpack.c.b16 %v962, %v962
  %v1017 = vpack.c.b16 %v963, %v963
  %v1018 = vpack.c.b16 %v964, %v964
  %v1019 = vpack.c.b16 %v965, %v965
  %v1020 = vpack.c.b16 %v966, %v966
  %v1021 = vpack.c.b16 %v967, %v967
  %v1022 = vpack.c.b16 %v968, %v968
  %v1023 = vpack.c.b16 %v969, %v969
  %v1024 = vpack.c.b16 %v970, %v970
  %v1025 = vpack.c.b16 %v971, %v971
  %v1026 = vpack.c.b16 %v972, %v972
  %v1027 = vpack.c.b16 %v973, %v973
  %v1028 = vpack.c.b16 %v974, %v974
  %v1029 = vpack.c.b16 %v975, %v975
  %v1030 = vpack.c.b16 %v976, %v976
  %v1031 = vpack.c.b16 %v977, %v977
  %1086 = vst [vmem:[%s3] sm:$0xf] %v978
  %1087 = vst [vmem:[%s3 + $0x4] sm:$0xf] %v979
  %1088 = vst [vmem:[%s3 + $0x8] sm:$0xf] %v980
  %1089 = vst [vmem:[%s3 + $0xc] sm:$0xf] %v981
  %1090 = vst [vmem:[%s3 + $0x10] sm:$0xf] %v982
  %1091 = vst [vmem:[%s3 + $0x14] sm:$0xf] %v983
  %1092 = vst [vmem:[%s3 + $0x18] sm:$0xf] %v984
  %1093 = vst [vmem:[%s3 + $0x1c] sm:$0xf] %v985
  %1094 = vst [vmem:[%s3 + $0x20] sm:$0xf] %v986
  %1095 = vst [vmem:[%s3 + $0x24] sm:$0xf] %v987
  %1096 = vst [vmem:[%s3 + $0x28] sm:$0xf] %v988
  %1097 = vst [vmem:[%s3 + $0x2c] sm:$0xf] %v989
  %1098 = vst [vmem:[%s3 + $0x30] sm:$0xf] %v990
  %1099 = vst [vmem:[%s3 + $0x34] sm:$0xf] %v991
  %1100 = vst [vmem:[%s3 + $0x38] sm:$0xf] %v992
  %1101 = vst [vmem:[%s3 + $0x3c] sm:$0xf] %v993
  %1102 = vst [vmem:[%s3 + $0x40] sm:$0xf] %v994
  %1103 = vst [vmem:[%s3 + $0x44] sm:$0xf] %v995
  %1104 = vst [vmem:[%s3 + $0x48] sm:$0xf] %v996
  %1105 = vst [vmem:[%s3 + $0x4c] sm:$0xf] %v997
  %1106 = vst [vmem:[%s3 + $0x50] sm:$0xf] %v998
  %1107 = vst [vmem:[%s3 + $0x54] sm:$0xf] %v999
  %1108 = vst [vmem:[%s3 + $0x58] sm:$0xf] %v1000
  %1109 = vst [vmem:[%s3 + $0x5c] sm:$0xf] %v1001
  %1110 = vst [vmem:[%s3 + $0x60] sm:$0xf] %v1002
  %1111 = vst [vmem:[%s3 + $0x64] sm:$0xf] %v1003
  %1112 = vst [vmem:[%s3 + $0x68] sm:$0xf] %v1004
  %1113 = vst [vmem:[%s3 + $0x6c] sm:$0xf] %v1005
  %1114 = vst [vmem:[%s3 + $0x70] sm:$0xf] %v1006
  %1115 = vst [vmem:[%s3 + $0x74] sm:$0xf] %v1007
  %1116 = vst [vmem:[%s3 + $0x78] sm:$0xf] %v1008
  %1117 = vst [vmem:[%s3 + $0x7c] sm:$0xf] %v1009
  %1118 = vst [vmem:[%s3 + $0x80] sm:$0xf] %v1010
  %1119 = vst [vmem:[%s3 + $0x84] sm:$0xf] %v1011
  %1120 = vst [vmem:[%s3 + $0x88] sm:$0xf] %v1012
  %1121 = vst [vmem:[%s3 + $0x8c] sm:$0xf] %v1013
  %1122 = vst [vmem:[%s3 + $0x90] sm:$0xf] %v1014
  %1123 = vst [vmem:[%s3 + $0x94] sm:$0xf] %v1015
  %1124 = vst [vmem:[%s3 + $0x98] sm:$0xf] %v1016
  %1125 = vst [vmem:[%s3 + $0x9c] sm:$0xf] %v1017
  %1126 = vst [vmem:[%s3 + $0xa0] sm:$0xf] %v1018
  %1127 = vst [vmem:[%s3 + $0xa4] sm:$0xf] %v1019
  %1128 = vst [vmem:[%s3 + $0xa8] sm:$0xf] %v1020
  %1129 = vst [vmem:[%s3 + $0xac] sm:$0xf] %v1021
  %1130 = vst [vmem:[%s3 + $0xb0] sm:$0xf] %v1022
  %1131 = vst [vmem:[%s3 + $0xb4] sm:$0xf] %v1023
  %1132 = vst [vmem:[%s3 + $0xb8] sm:$0xf] %v1024
  %1133 = vst [vmem:[%s3 + $0xbc] sm:$0xf] %v1025
  %1134 = vst [vmem:[%s3 + $0xc0] sm:$0xf] %v1026
  %1135 = vst [vmem:[%s3 + $0xc4] sm:$0xf] %v1027
  %1136 = vst [vmem:[%s3 + $0xc8] sm:$0xf] %v1028
  %1137 = vst [vmem:[%s3 + $0xcc] sm:$0xf] %v1029
  %1138 = vst [vmem:[%s3 + $0xd0] sm:$0xf] %v1030
  %1139 = vst [vmem:[%s3 + $0xd4] sm:$0xf] %v1031
  // Predicated region
  $region14: #{forward.2} parent=0 // pred_check
    _
  $region15: #{forward.2} parent=0 // pred_check_branch
    %1141 = sbr.rel (0) target = $region17
  $region16: #{forward.2} parent=0 // pred_region
    _
  $region17: #{forward.2} parent=0 // pred_fallthru
    _
  // Predicated region
  $region18: #{forward.2} parent=0 // pred_check
    _
  $region19: #{forward.2} parent=0 // pred_check_branch
    %1143 = sbr.rel (0) target = $region21
  $region20: #{forward.2} parent=0 // pred_region
    _
  $region21: #{forward.2} parent=0 // pred_fallthru
    _

// kernel: forward.3
$region0: #{forward.3}
  #allocation0 [shape = 'u32[]', space=smem, size = 0x4, offset = 0x4, fixed_abs, tag = 'smem constant byte address 0x4 - core index']
  #allocation1 [shape = 'u32[144,128]{1,0:T(1,128)}', space=vmem, size = 0x12000, scoped, tag = 'internal scratch']
  %s0 = inlined_call_operand.vmem [shape: bf16[128,810], index: 0, kind: input, shape index: {}]
  %s1 = inlined_call_operand.vmem [shape: bf16[810,128], index: 1, kind: input, shape index: {}]
  %s2 = inlined_call_operand.vmem [shape: f32[3,128], index: 2, kind: input, shape index: {}]
  %s3 = inlined_call_operand.vmem [shape: f32[5,64,128], index: 3, kind: input, shape index: {}]
  %s4 = inlined_call_operand.vmem [shape: f32[5,1], index: 4, kind: input, shape index: {}]
  %s5 = inlined_call_operand.vmem [shape: f32[5,2], index: 5, kind: output, shape index: {}]
  %s6 = sld [smem:[#allocation0]]
  $region30: #{forward.3} parent=0
    _
  %s8 = ssub.s32 1, %s6
  %s9 = scalar_select 0, %s8, %s6
  // Predicated region
  $region2: #{forward.3} parent=0 // pred_check
    _
  $region3: #{forward.3} parent=0 // pred_check_branch
    %11 = sbr.rel (0) target = $region5
  $region4: #{forward.3} parent=0 // pred_region
    _
  $region5: #{forward.3} parent=0 // pred_fallthru
    _
  // Predicated region
  $region6: #{forward.3} parent=0 // pred_check
    _
  $region7: #{forward.3} parent=0 // pred_check_branch
    %13 = sbr.rel (0) target = $region9
  $region8: #{forward.3} parent=0 // pred_region
    _
  $region9: #{forward.3} parent=0 // pred_fallthru
    _
  // Predicated region
  $region10: #{forward.3} parent=0 // pred_check
    _
  $region11: #{forward.3} parent=0 // pred_check_branch
    %15 = sbr.rel (0) target = $region13
  $region12: #{forward.3} parent=0 // pred_region
    _
  $region13: #{forward.3} parent=0 // pred_fallthru
    _
  // Predicated region
  $region14: #{forward.3} parent=0 // pred_check
    _
  $region15: #{forward.3} parent=0 // pred_check_branch
    %17 = sbr.rel (0) target = $region17
  $region16: #{forward.3} parent=0 // pred_region
    _
  $region17: #{forward.3} parent=0 // pred_fallthru
    _
  // Predicated region
  $region18: #{forward.3} parent=0 // pred_check
    _
  $region19: #{forward.3} parent=0 // pred_check_branch
    %19 = sbr.rel (0) target = $region21
  $region20: #{forward.3} parent=0 // pred_region
    _
  $region21: #{forward.3} parent=0 // pred_fallthru
    _
  %v21 = vld [vmem:[%s0] sm:$0xff]
  %v22 = vld [vmem:[%s0 + $0x8] sm:$0xff]
  %v23 = vld [vmem:[%s0 + $0x10] sm:$0xff]
  %v24 = vld [vmem:[%s0 + $0x18] sm:$0xf]
  %v25 = vld [vmem:[%s0 + $0x1c] sm:$0xff]
  %v26 = vld [vmem:[%s0 + $0x24] sm:$0xff]
  %v27 = vld [vmem:[%s0 + $0x2c] sm:$0xff]
  %v28 = vld [vmem:[%s0 + $0x34] sm:$0xf]
  %v29 = vld [vmem:[%s0 + $0x38] sm:$0xff]
  %v30 = vld [vmem:[%s0 + $0x40] sm:$0xff]
  %v31 = vld [vmem:[%s0 + $0x48] sm:$0xff]
  %v32 = vld [vmem:[%s0 + $0x50] sm:$0xf]
  %v33 = vld [vmem:[%s0 + $0x54] sm:$0xff]
  %v34 = vld [vmem:[%s0 + $0x5c] sm:$0xff]
  %v35 = vld [vmem:[%s0 + $0x64] sm:$0xff]
  %v36 = vld [vmem:[%s0 + $0x6c] sm:$0xf]
  %v37 = vld [vmem:[%s0 + $0x70] sm:$0xff]
  %v38 = vld [vmem:[%s0 + $0x78] sm:$0xff]
  %v39 = vld [vmem:[%s0 + $0x80] sm:$0xff]
  %v40 = vld [vmem:[%s0 + $0x88] sm:$0xf]
  %v41 = vld [vmem:[%s0 + $0x8c] sm:$0xff]
  %v42 = vld [vmem:[%s0 + $0x94] sm:$0xff]
  %v43 = vld [vmem:[%s0 + $0x9c] sm:$0xff]
  %v44 = vld [vmem:[%s0 + $0xa4] sm:$0xf]
  %v45 = vld [vmem:[%s0 + $0xa8] sm:$0xff]
  %v46 = vld [vmem:[%s0 + $0xb0] sm:$0xff]
  %v47 = vld [vmem:[%s0 + $0xb8] sm:$0xff]
  %v48 = vld [vmem:[%s0 + $0xc0] sm:$0xf]
  %v49 = vld [vmem:[%s0 + $0xc4] sm:$0xff]
  %v50 = vld [vmem:[%s0 + $0xcc] sm:$0xff]
  %v51 = vld [vmem:[%s0 + $0xd4] sm:$0xff]
  %v52 = vld [vmem:[%s0 + $0xdc] sm:$0xf]
  %v53 = vld [vmem:[%s0 + $0xe0] sm:$0xff]
  %v54 = vld [vmem:[%s0 + $0xe8] sm:$0xff]
  %v55 = vld [vmem:[%s0 + $0xf0] sm:$0xff]
  %v56 = vld [vmem:[%s0 + $0xf8] sm:$0xf]
  %v57 = vld [vmem:[%s0 + $0xfc] sm:$0xff]
  %v58 = vld [vmem:[%s0 + $0x104] sm:$0xff]
  %v59 = vld [vmem:[%s0 + $0x10c] sm:$0xff]
  %v60 = vld [vmem:[%s0 + $0x114] sm:$0xf]
  %v61 = vld [vmem:[%s0 + $0x118] sm:$0xff]
  %v62 = vld [vmem:[%s0 + $0x120] sm:$0xff]
  %v63 = vld [vmem:[%s0 + $0x128] sm:$0xff]
  %v64 = vld [vmem:[%s0 + $0x130] sm:$0xf]
  %v65 = vld [vmem:[%s0 + $0x134] sm:$0xff]
  %v66 = vld [vmem:[%s0 + $0x13c] sm:$0xff]
  %v67 = vld [vmem:[%s0 + $0x144] sm:$0xff]
  %v68 = vld [vmem:[%s0 + $0x14c] sm:$0xf]
  %v69 = vld [vmem:[%s0 + $0x150] sm:$0xff]
  %v70 = vld [vmem:[%s0 + $0x158] sm:$0xff]
  %v71 = vld [vmem:[%s0 + $0x160] sm:$0xff]
  %v72 = vld [vmem:[%s0 + $0x168] sm:$0xf]
  %v73 = vld [vmem:[%s0 + $0x16c] sm:$0xff]
  %v74 = vld [vmem:[%s0 + $0x174] sm:$0xff]
  %v75 = vld [vmem:[%s0 + $0x17c] sm:$0xff]
  %v76 = vld [vmem:[%s0 + $0x184] sm:$0xf]
  %v77 = vld [vmem:[%s0 + $0x188] sm:$0xff]
  %v78 = vld [vmem:[%s0 + $0x190] sm:$0xff]
  %v79 = vld [vmem:[%s0 + $0x198] sm:$0xff]
  %v80 = vld [vmem:[%s0 + $0x1a0] sm:$0xf]
  %v81 = vld [vmem:[%s0 + $0x1a4] sm:$0xff]
  %v82 = vld [vmem:[%s0 + $0x1ac] sm:$0xff]
  %v83 = vld [vmem:[%s0 + $0x1b4] sm:$0xff]
  %v84 = vld [vmem:[%s0 + $0x1bc] sm:$0xf]
  %v85 = vld [vmem:[%s1] sm:$0xf]
  %v86 = vld [vmem:[%s1 + $0x4] sm:$0xf]
  %v87 = vld [vmem:[%s1 + $0x8] sm:$0xf]
  %v88 = vld [vmem:[%s1 + $0xc] sm:$0xf]
  %v89 = vld [vmem:[%s1 + $0x10] sm:$0xf]
  %v90 = vld [vmem:[%s1 + $0x14] sm:$0xf]
  %v91 = vld [vmem:[%s1 + $0x18] sm:$0xf]
  %v92 = vld [vmem:[%s1 + $0x1c] sm:$0xf]
  %v93 = vld [vmem:[%s1 + $0x20] sm:$0xf]
  %v94 = vld [vmem:[%s1 + $0x24] sm:$0xf]
  %v95 = vld [vmem:[%s1 + $0x28] sm:$0xf]
  %v96 = vld [vmem:[%s1 + $0x2c] sm:$0xf]
  %v97 = vld [vmem:[%s1 + $0x30] sm:$0xf]
  %v98 = vld [vmem:[%s1 + $0x34] sm:$0xf]
  %v99 = vld [vmem:[%s1 + $0x38] sm:$0xf]
  %v100 = vld [vmem:[%s1 + $0x3c] sm:$0xf]
  %v101 = vld [vmem:[%s1 + $0x40] sm:$0xf]
  %v102 = vld [vmem:[%s1 + $0x44] sm:$0xf]
  %v103 = vld [vmem:[%s1 + $0x48] sm:$0xf]
  %v104 = vld [vmem:[%s1 + $0x4c] sm:$0xf]
  %v105 = vld [vmem:[%s1 + $0x50] sm:$0xf]
  %v106 = vld [vmem:[%s1 + $0x54] sm:$0xf]
  %v107 = vld [vmem:[%s1 + $0x58] sm:$0xf]
  %v108 = vld [vmem:[%s1 + $0x5c] sm:$0xf]
  %v109 = vld [vmem:[%s1 + $0x60] sm:$0xf]
  %v110 = vld [vmem:[%s1 + $0x64] sm:$0xf]
  %v111 = vld [vmem:[%s1 + $0x68] sm:$0xf]
  %v112 = vld [vmem:[%s1 + $0x6c] sm:$0xf]
  %v113 = vld [vmem:[%s1 + $0x70] sm:$0xf]
  %v114 = vld [vmem:[%s1 + $0x74] sm:$0xf]
  %v115 = vld [vmem:[%s1 + $0x78] sm:$0xf]
  %v116 = vld [vmem:[%s1 + $0x7c] sm:$0xf]
  %v117 = vld [vmem:[%s1 + $0x80] sm:$0xf]
  %v118 = vld [vmem:[%s1 + $0x84] sm:$0xf]
  %v119 = vld [vmem:[%s1 + $0x88] sm:$0xf]
  %v120 = vld [vmem:[%s1 + $0x8c] sm:$0xf]
  %v121 = vld [vmem:[%s1 + $0x90] sm:$0xf]
  %v122 = vld [vmem:[%s1 + $0x94] sm:$0xf]
  %v123 = vld [vmem:[%s1 + $0x98] sm:$0xf]
  %v124 = vld [vmem:[%s1 + $0x9c] sm:$0xf]
  %v125 = vld [vmem:[%s1 + $0xa0] sm:$0xf]
  %v126 = vld [vmem:[%s1 + $0xa4] sm:$0xf]
  %v127 = vld [vmem:[%s1 + $0xa8] sm:$0xf]
  %v128 = vld [vmem:[%s1 + $0xac] sm:$0xf]
  %v129 = vld [vmem:[%s1 + $0xb0] sm:$0xf]
  %v130 = vld [vmem:[%s1 + $0xb4] sm:$0xf]
  %v131 = vld [vmem:[%s1 + $0xb8] sm:$0xf]
  %v132 = vld [vmem:[%s1 + $0xbc] sm:$0xf]
  %v133 = vld [vmem:[%s1 + $0xc0] sm:$0xf]
  %v134 = vld [vmem:[%s1 + $0xc4] sm:$0xf]
  %v135 = vld [vmem:[%s1 + $0xc8] sm:$0xf]
  %v136 = vld [vmem:[%s1 + $0xcc] sm:$0xf]
  %v137 = vld [vmem:[%s1 + $0xd0] sm:$0xf]
  %v138 = vld [vmem:[%s1 + $0xd4] sm:$0xf]
  %v139 = vld [vmem:[%s1 + $0xd8] sm:$0xf]
  %v140 = vld [vmem:[%s1 + $0xdc] sm:$0xf]
  %v141 = vld [vmem:[%s1 + $0xe0] sm:$0xf]
  %v142 = vld [vmem:[%s1 + $0xe4] sm:$0xf]
  %v143 = vld [vmem:[%s1 + $0xe8] sm:$0xf]
  %v144 = vld [vmem:[%s1 + $0xec] sm:$0xf]
  %v145 = vld [vmem:[%s1 + $0xf0] sm:$0xf]
  %v146 = vld [vmem:[%s1 + $0xf4] sm:$0xf]
  %v147 = vld [vmem:[%s1 + $0xf8] sm:$0xf]
  %v148 = vld [vmem:[%s1 + $0xfc] sm:$0xf]
  %v149 = vld [vmem:[%s1 + $0x100] sm:$0xf]
  %v150 = vld [vmem:[%s1 + $0x104] sm:$0xf]
  %v151 = vld [vmem:[%s1 + $0x108] sm:$0xf]
  %v152 = vld [vmem:[%s1 + $0x10c] sm:$0xf]
  %v153 = vld [vmem:[%s1 + $0x110] sm:$0xf]
  %v154 = vld [vmem:[%s1 + $0x114] sm:$0xf]
  %v155 = vld [vmem:[%s1 + $0x118] sm:$0xf]
  %v156 = vld [vmem:[%s1 + $0x11c] sm:$0xf]
  %v157 = vld [vmem:[%s1 + $0x120] sm:$0xf]
  %v158 = vld [vmem:[%s1 + $0x124] sm:$0xf]
  %v159 = vld [vmem:[%s1 + $0x128] sm:$0xf]
  %v160 = vld [vmem:[%s1 + $0x12c] sm:$0xf]
  %v161 = vld [vmem:[%s1 + $0x130] sm:$0xf]
  %v162 = vld [vmem:[%s1 + $0x134] sm:$0xf]
  %v163 = vld [vmem:[%s1 + $0x138] sm:$0xf]
  %v164 = vld [vmem:[%s1 + $0x13c] sm:$0xf]
  %v165 = vld [vmem:[%s1 + $0x140] sm:$0xf]
  %v166 = vld [vmem:[%s1 + $0x144] sm:$0xf]
  %v167 = vld [vmem:[%s1 + $0x148] sm:$0xf]
  %v168 = vld [vmem:[%s1 + $0x14c] sm:$0xf]
  %v169 = vld [vmem:[%s1 + $0x150] sm:$0xf]
  %v170 = vld [vmem:[%s1 + $0x154] sm:$0xf]
  %v171 = vld [vmem:[%s1 + $0x158] sm:$0xf]
  %v172 = vld [vmem:[%s1 + $0x15c] sm:$0xf]
  %v173 = vld [vmem:[%s1 + $0x160] sm:$0xf]
  %v174 = vld [vmem:[%s1 + $0x164] sm:$0xf]
  %v175 = vld [vmem:[%s1 + $0x168] sm:$0xf]
  %v176 = vld [vmem:[%s1 + $0x16c] sm:$0xf]
  %v177 = vld [vmem:[%s1 + $0x170] sm:$0xf]
  %v178 = vld [vmem:[%s1 + $0x174] sm:$0xf]
  %v179 = vld [vmem:[%s1 + $0x178] sm:$0xf]
  %v180 = vld [vmem:[%s1 + $0x17c] sm:$0xf]
  %v181 = vld [vmem:[%s1 + $0x180] sm:$0xf]
  %v182 = vld [vmem:[%s1 + $0x184] sm:$0xf]
  %v183 = vld [vmem:[%s1 + $0x188] sm:$0xf]
  %v184 = vld [vmem:[%s1 + $0x18c] sm:$0xf]
  %v185 = vld [vmem:[%s1 + $0x190] sm:$0xf]
  %v186 = vld [vmem:[%s1 + $0x194] sm:$0x1]
  %v187 = vld [vmem:[%s2] sm:$0x1]
  %v188 = vlaneseq
  %v189 = vshrl.u32 %v188, 7
  %v190 = vsub.s32 0, %v189
  %v191 = vrot.slane %v187, %v190
  %v256 = vunpack.c.l.b16 %v21
  %v257 = vunpack.c.h.b16 %v21
  %v258 = vunpack.c.l.b16 %v22
  %v259 = vunpack.c.h.b16 %v22
  %v260 = vunpack.c.l.b16 %v23
  %v261 = vunpack.c.h.b16 %v23
  %v262 = vunpack.c.l.b16 %v24
  %v263 = vunpack.c.l.b16 %v25
  %v264 = vunpack.c.h.b16 %v25
  %v265 = vunpack.c.l.b16 %v26
  %v266 = vunpack.c.h.b16 %v26
  %v267 = vunpack.c.l.b16 %v27
  %v268 = vunpack.c.h.b16 %v27
  %v269 = vunpack.c.l.b16 %v28
  %v270 = vunpack.c.l.b16 %v29
  %v271 = vunpack.c.h.b16 %v29
  %v272 = vunpack.c.l.b16 %v30
  %v273 = vunpack.c.h.b16 %v30
  %v274 = vunpack.c.l.b16 %v31
  %v275 = vunpack.c.h.b16 %v31
  %v276 = vunpack.c.l.b16 %v32
  %v277 = vunpack.c.l.b16 %v33
  %v278 = vunpack.c.h.b16 %v33
  %v279 = vunpack.c.l.b16 %v34
  %v280 = vunpack.c.h.b16 %v34
  %v281 = vunpack.c.l.b16 %v35
  %v282 = vunpack.c.h.b16 %v35
  %v283 = vunpack.c.l.b16 %v36
  %v284 = vunpack.c.l.b16 %v37
  %v285 = vunpack.c.h.b16 %v37
  %v286 = vunpack.c.l.b16 %v38
  %v287 = vunpack.c.h.b16 %v38
  %v288 = vunpack.c.l.b16 %v39
  %v289 = vunpack.c.h.b16 %v39
  %v290 = vunpack.c.l.b16 %v40
  %v291 = vunpack.c.l.b16 %v41
  %v292 = vunpack.c.h.b16 %v41
  %v293 = vunpack.c.l.b16 %v42
  %v294 = vunpack.c.h.b16 %v42
  %v295 = vunpack.c.l.b16 %v43
  %v296 = vunpack.c.h.b16 %v43
  %v297 = vunpack.c.l.b16 %v44
  %v298 = vunpack.c.l.b16 %v45
  %v299 = vunpack.c.h.b16 %v45
  %v300 = vunpack.c.l.b16 %v46
  %v301 = vunpack.c.h.b16 %v46
  %v302 = vunpack.c.l.b16 %v47
  %v303 = vunpack.c.h.b16 %v47
  %v304 = vunpack.c.l.b16 %v48
  %v305 = vunpack.c.l.b16 %v49
  %v306 = vunpack.c.h.b16 %v49
  %v307 = vunpack.c.l.b16 %v50
  %v308 = vunpack.c.h.b16 %v50
  %v309 = vunpack.c.l.b16 %v51
  %v310 = vunpack.c.h.b16 %v51
  %v311 = vunpack.c.l.b16 %v52
  %v312 = vunpack.c.l.b16 %v53
  %v313 = vunpack.c.h.b16 %v53
  %v314 = vunpack.c.l.b16 %v54
  %v315 = vunpack.c.h.b16 %v54
  %v316 = vunpack.c.l.b16 %v55
  %v317 = vunpack.c.h.b16 %v55
  %v318 = vunpack.c.l.b16 %v56
  %v319 = vunpack.c.l.b16 %v57
  %v320 = vunpack.c.h.b16 %v57
  %v321 = vunpack.c.l.b16 %v58
  %v322 = vunpack.c.h.b16 %v58
  %v323 = vunpack.c.l.b16 %v59
  %v324 = vunpack.c.h.b16 %v59
  %v325 = vunpack.c.l.b16 %v60
  %v326 = vunpack.c.l.b16 %v61
  %v327 = vunpack.c.h.b16 %v61
  %v328 = vunpack.c.l.b16 %v62
  %v329 = vunpack.c.h.b16 %v62
  %v330 = vunpack.c.l.b16 %v63
  %v331 = vunpack.c.h.b16 %v63
  %v332 = vunpack.c.l.b16 %v64
  %v333 = vunpack.c.l.b16 %v65
  %v334 = vunpack.c.h.b16 %v65
  %v335 = vunpack.c.l.b16 %v66
  %v336 = vunpack.c.h.b16 %v66
  %v337 = vunpack.c.l.b16 %v67
  %v338 = vunpack.c.h.b16 %v67
  %v339 = vunpack.c.l.b16 %v68
  %v340 = vunpack.c.l.b16 %v69
  %v341 = vunpack.c.h.b16 %v69
  %v342 = vunpack.c.l.b16 %v70
  %v343 = vunpack.c.h.b16 %v70
  %v344 = vunpack.c.l.b16 %v71
  %v345 = vunpack.c.h.b16 %v71
  %v346 = vunpack.c.l.b16 %v72
  %v347 = vunpack.c.l.b16 %v73
  %v348 = vunpack.c.h.b16 %v73
  %v349 = vunpack.c.l.b16 %v74
  %v350 = vunpack.c.h.b16 %v74
  %v351 = vunpack.c.l.b16 %v75
  %v352 = vunpack.c.h.b16 %v75
  %v353 = vunpack.c.l.b16 %v76
  %v354 = vunpack.c.l.b16 %v77
  %v355 = vunpack.c.h.b16 %v77
  %v356 = vunpack.c.l.b16 %v78
  %v357 = vunpack.c.h.b16 %v78
  %v358 = vunpack.c.l.b16 %v79
  %v359 = vunpack.c.h.b16 %v79
  %v360 = vunpack.c.l.b16 %v80
  %v361 = vunpack.c.l.b16 %v81
  %v362 = vunpack.c.h.b16 %v81
  %v363 = vunpack.c.l.b16 %v82
  %v364 = vunpack.c.h.b16 %v82
  %v365 = vunpack.c.l.b16 %v83
  %v366 = vunpack.c.h.b16 %v83
  %v367 = vunpack.c.l.b16 %v84
  %v368 = vpack.c.b16 %v263, %v256
  %v369 = vpack.c.b16 %v264, %v257
  %v370 = vpack.c.b16 %v265, %v258
  %v371 = vpack.c.b16 %v266, %v259
  %v372 = vpack.c.b16 %v267, %v260
  %v373 = vpack.c.b16 %v268, %v261
  %v374 = vpack.c.b16 %v269, %v262
  %v375 = vpack.c.b16 %v277, %v270
  %v376 = vpack.c.b16 %v278, %v271
  %v377 = vpack.c.b16 %v279, %v272
  %v378 = vpack.c.b16 %v280, %v273
  %v379 = vpack.c.b16 %v281, %v274
  %v380 = vpack.c.b16 %v282, %v275
  %v381 = vpack.c.b16 %v283, %v276
  %v382 = vpack.c.b16 %v291, %v284
  %v383 = vpack.c.b16 %v292, %v285
  %v384 = vpack.c.b16 %v293, %v286
  %v385 = vpack.c.b16 %v294, %v287
  %v386 = vpack.c.b16 %v295, %v288
  %v387 = vpack.c.b16 %v296, %v289
  %v388 = vpack.c.b16 %v297, %v290
  %v389 = vpack.c.b16 %v305, %v298
  %v390 = vpack.c.b16 %v306, %v299
  %v391 = vpack.c.b16 %v307, %v300
  %v392 = vpack.c.b16 %v308, %v301
  %v393 = vpack.c.b16 %v309, %v302
  %v394 = vpack.c.b16 %v310, %v303
  %v395 = vpack.c.b16 %v311, %v304
  %v396 = vpack.c.b16 %v319, %v312
  %v397 = vpack.c.b16 %v320, %v313
  %v398 = vpack.c.b16 %v321, %v314
  %v399 = vpack.c.b16 %v322, %v315
  %v400 = vpack.c.b16 %v323, %v316
  %v401 = vpack.c.b16 %v324, %v317
  %v402 = vpack.c.b16 %v325, %v318
  %v403 = vpack.c.b16 %v333, %v326
  %v404 = vpack.c.b16 %v334, %v327
  %v405 = vpack.c.b16 %v335, %v328
  %v406 = vpack.c.b16 %v336, %v329
  %v407 = vpack.c.b16 %v337, %v330
  %v408 = vpack.c.b16 %v338, %v331
  %v409 = vpack.c.b16 %v339, %v332
  %v410 = vpack.c.b16 %v347, %v340
  %v411 = vpack.c.b16 %v348, %v341
  %v412 = vpack.c.b16 %v349, %v342
  %v413 = vpack.c.b16 %v350, %v343
  %v414 = vpack.c.b16 %v351, %v344
  %v415 = vpack.c.b16 %v352, %v345
  %v416 = vpack.c.b16 %v353, %v346
  %v417 = vpack.c.b16 %v361, %v354
  %v418 = vpack.c.b16 %v362, %v355
  %v419 = vpack.c.b16 %v363, %v356
  %v420 = vpack.c.b16 %v364, %v357
  %v421 = vpack.c.b16 %v365, %v358
  %v422 = vpack.c.b16 %v366, %v359
  %v423 = vpack.c.b16 %v367, %v360
  %v574 = vunpack.c.l.b16 %v85
  %v575 = vunpack.c.l.b16 %v86
  %v576 = vunpack.c.l.b16 %v87
  %v577 = vunpack.c.l.b16 %v88
  %v578 = vunpack.c.l.b16 %v89
  %v579 = vunpack.c.l.b16 %v90
  %v580 = vunpack.c.l.b16 %v91
  %v581 = vunpack.c.l.b16 %v92
  %v582 = vunpack.c.l.b16 %v93
  %v583 = vunpack.c.l.b16 %v94
  %v584 = vunpack.c.l.b16 %v95
  %v585 = vunpack.c.l.b16 %v96
  %v586 = vunpack.c.l.b16 %v97
  %v587 = vunpack.c.l.b16 %v98
  %v588 = vunpack.c.l.b16 %v99
  %v589 = vunpack.c.l.b16 %v100
  %v590 = vunpack.c.l.b16 %v101
  %v591 = vunpack.c.l.b16 %v102
  %v592 = vunpack.c.l.b16 %v103
  %v593 = vunpack.c.l.b16 %v104
  %v594 = vunpack.c.l.b16 %v105
  %v595 = vunpack.c.l.b16 %v106
  %v596 = vunpack.c.l.b16 %v107
  %v597 = vunpack.c.l.b16 %v108
  %v598 = vunpack.c.l.b16 %v109
  %v599 = vunpack.c.l.b16 %v110
  %v600 = vunpack.c.l.b16 %v111
  %v601 = vunpack.c.l.b16 %v112
  %v602 = vunpack.c.l.b16 %v113
  %v603 = vunpack.c.l.b16 %v114
  %v604 = vunpack.c.l.b16 %v115
  %v605 = vunpack.c.l.b16 %v116
  %v606 = vunpack.c.l.b16 %v117
  %v607 = vunpack.c.l.b16 %v118
  %v608 = vunpack.c.l.b16 %v119
  %v609 = vunpack.c.l.b16 %v120
  %v610 = vunpack.c.l.b16 %v121
  %v611 = vunpack.c.l.b16 %v122
  %v612 = vunpack.c.l.b16 %v123
  %v613 = vunpack.c.l.b16 %v124
  %v614 = vunpack.c.l.b16 %v125
  %v615 = vunpack.c.l.b16 %v126
  %v616 = vunpack.c.l.b16 %v127
  %v617 = vunpack.c.l.b16 %v128
  %v618 = vunpack.c.l.b16 %v129
  %v619 = vunpack.c.l.b16 %v130
  %v620 = vunpack.c.l.b16 %v131
  %v621 = vunpack.c.l.b16 %v132
  %v622 = vunpack.c.l.b16 %v133
  %v623 = vunpack.c.l.b16 %v134
  %v624 = vunpack.c.l.b16 %v135
  %v625 = vunpack.c.l.b16 %v136
  %v626 = vunpack.c.l.b16 %v137
  %v627 = vunpack.c.l.b16 %v138
  %v628 = vunpack.c.l.b16 %v139
  %v629 = vunpack.c.l.b16 %v140
  %v630 = vunpack.c.l.b16 %v141
  %v631 = vunpack.c.l.b16 %v142
  %v632 = vunpack.c.l.b16 %v143
  %v633 = vunpack.c.l.b16 %v144
  %v634 = vunpack.c.l.b16 %v145
  %v635 = vunpack.c.l.b16 %v146
  %v636 = vunpack.c.l.b16 %v147
  %v637 = vunpack.c.l.b16 %v148
  %v638 = vunpack.c.l.b16 %v149
  %v639 = vunpack.c.l.b16 %v150
  %v640 = vunpack.c.l.b16 %v151
  %v641 = vunpack.c.l.b16 %v152
  %v642 = vunpack.c.l.b16 %v153
  %v643 = vunpack.c.l.b16 %v154
  %v644 = vunpack.c.l.b16 %v155
  %v645 = vunpack.c.l.b16 %v156
  %v646 = vunpack.c.l.b16 %v157
  %v647 = vunpack.c.l.b16 %v158
  %v648 = vunpack.c.l.b16 %v159
  %v649 = vunpack.c.l.b16 %v160
  %v650 = vunpack.c.l.b16 %v161
  %v651 = vunpack.c.l.b16 %v162
  %v652 = vunpack.c.l.b16 %v163
  %v653 = vunpack.c.l.b16 %v164
  %v654 = vunpack.c.l.b16 %v165
  %v655 = vunpack.c.l.b16 %v166
  %v656 = vunpack.c.l.b16 %v167
  %v657 = vunpack.c.l.b16 %v168
  %v658 = vunpack.c.l.b16 %v169
  %v659 = vunpack.c.l.b16 %v170
  %v660 = vunpack.c.l.b16 %v171
  %v661 = vunpack.c.l.b16 %v172
  %v662 = vunpack.c.l.b16 %v173
  %v663 = vunpack.c.l.b16 %v174
  %v664 = vunpack.c.l.b16 %v175
  %v665 = vunpack.c.l.b16 %v176
  %v666 = vunpack.c.l.b16 %v177
  %v667 = vunpack.c.l.b16 %v178
  %v668 = vunpack.c.l.b16 %v179
  %v669 = vunpack.c.l.b16 %v180
  %v670 = vunpack.c.l.b16 %v181
  %v671 = vunpack.c.l.b16 %v182
  %v672 = vunpack.c.l.b16 %v183
  %v673 = vunpack.c.l.b16 %v184
  %v674 = vunpack.c.l.b16 %v185
  %v675 = vunpack.c.l.b16 %v186
  %v676 = vpack.c.b16 %v575, %v574
  %v677 = vpack.c.b16 %v577, %v576
  %v678 = vpack.c.b16 %v579, %v578
  %v679 = vpack.c.b16 %v581, %v580
  %v680 = vpack.c.b16 %v583, %v582
  %v681 = vpack.c.b16 %v585, %v584
  %v682 = vpack.c.b16 %v587, %v586
  %v683 = vpack.c.b16 %v589, %v588
  %v684 = vpack.c.b16 %v591, %v590
  %v685 = vpack.c.b16 %v593, %v592
  %v686 = vpack.c.b16 %v595, %v594
  %v687 = vpack.c.b16 %v597, %v596
  %v688 = vpack.c.b16 %v599, %v598
  %v689 = vpack.c.b16 %v601, %v600
  %v690 = vpack.c.b16 %v603, %v602
  %v691 = vpack.c.b16 %v605, %v604
  %v692 = vpack.c.b16 %v607, %v606
  %v693 = vpack.c.b16 %v609, %v608
  %v694 = vpack.c.b16 %v611, %v610
  %v695 = vpack.c.b16 %v613, %v612
  %v696 = vpack.c.b16 %v615, %v614
  %v697 = vpack.c.b16 %v617, %v616
  %v698 = vpack.c.b16 %v619, %v618
  %v699 = vpack.c.b16 %v621, %v620
  %v700 = vpack.c.b16 %v623, %v622
  %v701 = vpack.c.b16 %v625, %v624
  %v702 = vpack.c.b16 %v627, %v626
  %v703 = vpack.c.b16 %v629, %v628
  %v704 = vpack.c.b16 %v631, %v630
  %v705 = vpack.c.b16 %v633, %v632
  %v706 = vpack.c.b16 %v635, %v634
  %v707 = vpack.c.b16 %v637, %v636
  %v708 = vpack.c.b16 %v639, %v638
  %v709 = vpack.c.b16 %v641, %v640
  %v710 = vpack.c.b16 %v643, %v642
  %v711 = vpack.c.b16 %v645, %v644
  %v712 = vpack.c.b16 %v647, %v646
  %v713 = vpack.c.b16 %v649, %v648
  %v714 = vpack.c.b16 %v651, %v650
  %v715 = vpack.c.b16 %v653, %v652
  %v716 = vpack.c.b16 %v655, %v654
  %v717 = vpack.c.b16 %v657, %v656
  %v718 = vpack.c.b16 %v659, %v658
  %v719 = vpack.c.b16 %v661, %v660
  %v720 = vpack.c.b16 %v663, %v662
  %v721 = vpack.c.b16 %v665, %v664
  %v722 = vpack.c.b16 %v667, %v666
  %v723 = vpack.c.b16 %v669, %v668
  %v724 = vpack.c.b16 %v671, %v670
  %v725 = vpack.c.b16 %v673, %v672
  %v726 = vpack.c.b16 %v675, %v674
  %vm777 = vcmask 343040
  %v779 = vsel %vm777, %v374, 0
  %v782 = vsel %vm777, %v381, 0
  %v785 = vsel %vm777, %v388, 0
  %v788 = vsel %vm777, %v395, 0
  %v791 = vsel %vm777, %v402, 0
  %v794 = vsel %vm777, %v409, 0
  %v797 = vsel %vm777, %v416, 0
  %v800 = vsel %vm777, %v423, 0
  %vm802 = vcmask 1044480
  %v804 = vsel %vm802, %v726, 0
  %806 = vmatprep.subr.bf16.mxu0 0
  %807 = vmatpush1.bf16.msra.mxu0 %v676
  %808 = vmatprep.subr.bf16.mxu0 0
  %809 = vmatpush1.bf16.msra.mxu0 %v677
  %810 = vmatprep.subr.bf16.mxu0 0
  %811 = vmatpush1.bf16.msra.mxu0 %v678
  %812 = vmatprep.subr.bf16.mxu0 0
  %813 = vmatpush1.bf16.msra.mxu0 %v679
  %814 = vmatprep.subr.bf16.mxu0 0
  %815 = vmatpush1.bf16.msra.mxu0 %v680
  %816 = vmatprep.subr.bf16.mxu0 0
  %817 = vmatpush1.bf16.msra.mxu0 %v681
  %818 = vmatprep.subr.bf16.mxu0 0
  %819 = vmatpush1.bf16.msra.mxu0 %v682
  %820 = vmatprep.subr.bf16.mxu0 0
  %821 = vmatpush1.bf16.msra.mxu0 %v683
  %822 = vmatprep.subr.bf16.mxu0 0
  %823 = vmatpush1.bf16.msra.mxu0 %v684
  %824 = vmatprep.subr.bf16.mxu0 0
  %825 = vmatpush1.bf16.msra.mxu0 %v685
  %826 = vmatprep.subr.bf16.mxu0 0
  %827 = vmatpush1.bf16.msra.mxu0 %v686
  %828 = vmatprep.subr.bf16.mxu0 0
  %829 = vmatpush1.bf16.msra.mxu0 %v687
  %830 = vmatprep.subr.bf16.mxu0 0
  %831 = vmatpush1.bf16.msra.mxu0 %v688
  %832 = vmatprep.subr.bf16.mxu0 0
  %833 = vmatpush1.bf16.msra.mxu0 %v689
  %834 = vmatprep.subr.bf16.mxu0 0
  %835 = vmatpush1.bf16.msra.mxu0 %v690
  %836 = vmatprep.subr.bf16.mxu0 0
  %837 = vmatpush1.bf16.msra.mxu0 %v691
  %838 = vmatprep.mubr.bf16.mxu0 %v369
  %839 = vmatmul.mubr.bf16.gmra.mrb[0].mxu0 %v368
  %v840 = vpop.f32.mrb[0].mxu0
  %v841 = vadd.f32 %v191, %v840
  %v842 = vpop.f32.mrb[0].mxu0
  %v843 = vpop.f32.mrb[0].mxu0
  %v844 = vadd.f32 %v191, %v843
  %v845 = vpop.f32.mrb[0].mxu0
  %846 = vmatprep.mubr.bf16.mxu0 %v376
  %847 = vmatmul.mubr.bf16.gmra.mrb[0].mxu0 %v375
  %v848 = vpop.f32.mrb[0].mxu0
  %v849 = vadd.f32 %v191, %v848
  %v850 = vpop.f32.mrb[0].mxu0
  %v851 = vpop.f32.mrb[0].mxu0
  %v852 = vadd.f32 %v191, %v851
  %v853 = vpop.f32.mrb[0].mxu0
  %854 = vmatprep.mubr.bf16.mxu0 %v383
  %855 = vmatmul.mubr.bf16.gmra.mrb[0].mxu0 %v382
  %v856 = vpop.f32.mrb[0].mxu0
  %v857 = vadd.f32 %v191, %v856
  %v858 = vpop.f32.mrb[0].mxu0
  %v859 = vpop.f32.mrb[0].mxu0
  %v860 = vadd.f32 %v191, %v859
  %v861 = vpop.f32.mrb[0].mxu0
  %862 = vmatprep.mubr.bf16.mxu0 %v390
  %863 = vmatmul.mubr.bf16.gmra.mrb[0].mxu0 %v389
  %v864 = vpop.f32.mrb[0].mxu0
  %v865 = vadd.f32 %v191, %v864
  %v866 = vpop.f32.mrb[0].mxu0
  %v867 = vpop.f32.mrb[0].mxu0
  %v868 = vadd.f32 %v191, %v867
  %v869 = vpop.f32.mrb[0].mxu0
  %870 = vmatprep.mubr.bf16.mxu0 %v397
  %871 = vmatmul.mubr.bf16.gmra.mrb[0].mxu0 %v396
  %v872 = vpop.f32.mrb[0].mxu0
  %v873 = vadd.f32 %v191, %v872
  %v874 = vpop.f32.mrb[0].mxu0
  %v875 = vpop.f32.mrb[0].mxu0
  %v876 = vadd.f32 %v191, %v875
  %v877 = vpop.f32.mrb[0].mxu0
  %878 = vmatprep.mubr.bf16.mxu0 %v404
  %879 = vmatmul.mubr.bf16.gmra.mrb[0].mxu0 %v403
  %v880 = vpop.f32.mrb[0].mxu0
  %v881 = vadd.f32 %v191, %v880
  %v882 = vpop.f32.mrb[0].mxu0
  %v883 = vpop.f32.mrb[0].mxu0
  %v884 = vadd.f32 %v191, %v883
  %v885 = vpop.f32.mrb[0].mxu0
  %886 = vmatprep.mubr.bf16.mxu0 %v411
  %887 = vmatmul.mubr.bf16.gmra.mrb[0].mxu0 %v410
  %v888 = vpop.f32.mrb[0].mxu0
  %v889 = vadd.f32 %v191, %v888
  %v890 = vpop.f32.mrb[0].mxu0
  %v891 = vpop.f32.mrb[0].mxu0
  %v892 = vadd.f32 %v191, %v891
  %v893 = vpop.f32.mrb[0].mxu0
  %894 = vmatprep.mubr.bf16.mxu0 %v418
  %895 = vmatmul.mubr.bf16.gmra.mrb[0].mxu0 %v417
  %v896 = vpop.f32.mrb[0].mxu0
  %v897 = vadd.f32 %v191, %v896
  %v898 = vpop.f32.mrb[0].mxu0
  %v899 = vpop.f32.mrb[0].mxu0
  %v900 = vadd.f32 %v191, %v899
  %v901 = vpop.f32.mrb[0].mxu0
  %902 = vdwg.mxu0
  %903 = vmatprep.subr.bf16.mxu0 0
  %904 = vmatpush1.bf16.msra.mxu0 %v692
  %905 = vmatprep.subr.bf16.mxu0 0
  %906 = vmatpush1.bf16.msra.mxu0 %v693
  %907 = vmatprep.subr.bf16.mxu0 0
  %908 = vmatpush1.bf16.msra.mxu0 %v694
  %909 = vmatprep.subr.bf16.mxu0 0
  %910 = vmatpush1.bf16.msra.mxu0 %v695
  %911 = vmatprep.subr.bf16.mxu0 0
  %912 = vmatpush1.bf16.msra.mxu0 %v696
  %913 = vmatprep.subr.bf16.mxu0 0
  %914 = vmatpush1.bf16.msra.mxu0 %v697
  %915 = vmatprep.subr.bf16.mxu0 0
  %916 = vmatpush1.bf16.msra.mxu0 %v698
  %917 = vmatprep.subr.bf16.mxu0 0
  %918 = vmatpush1.bf16.msra.mxu0 %v699
  %919 = vmatprep.subr.bf16.mxu0 0
  %920 = vmatpush1.bf16.msra.mxu0 %v700
  %921 = vmatprep.subr.bf16.mxu0 0
  %922 = vmatpush1.bf16.msra.mxu0 %v701
  %923 = vmatprep.subr.bf16.mxu0 0
  %924 = vmatpush1.bf16.msra.mxu0 %v702
  %925 = vmatprep.subr.bf16.mxu0 0
  %926 = vmatpush1.bf16.msra.mxu0 %v703
  %927 = vmatprep.subr.bf16.mxu0 0
  %928 = vmatpush1.bf16.msra.mxu0 %v704
  %929 = vmatprep.subr.bf16.mxu0 0
  %930 = vmatpush1.bf16.msra.mxu0 %v705
  %931 = vmatprep.subr.bf16.mxu0 0
  %932 = vmatpush1.bf16.msra.mxu0 %v706
  %933 = vmatprep.subr.bf16.mxu0 0
  %934 = vmatpush1.bf16.msra.mxu0 %v707
  %935 = vmatprep.mubr.bf16.mxu0 %v371
  %936 = vmatmul.mubr.bf16.gmra.mrb[0].mxu0 %v370
  %v937 = vpop.f32.mrb[0].mxu0
  %v938 = vadd.f32 %v841, %v937
  %v939 = vpop.f32.mrb[0].mxu0
  %v940 = vpop.f32.mrb[0].mxu0
  %v941 = vadd.f32 %v844, %v940
  %v942 = vpop.f32.mrb[0].mxu0
  %943 = vmatprep.mubr.bf16.mxu0 %v378
  %944 = vmatmul.mubr.bf16.gmra.mrb[0].mxu0 %v377
  %v945 = vpop.f32.mrb[0].mxu0
  %v946 = vadd.f32 %v849, %v945
  %v947 = vpop.f32.mrb[0].mxu0
  %v948 = vpop.f32.mrb[0].mxu0
  %v949 = vadd.f32 %v852, %v948
  %v950 = vpop.f32.mrb[0].mxu0
  %951 = vmatprep.mubr.bf16.mxu0 %v385
  %952 = vmatmul.mubr.bf16.gmra.mrb[0].mxu0 %v384
  %v953 = vpop.f32.mrb[0].mxu0
  %v954 = vadd.f32 %v857, %v953
  %v955 = vpop.f32.mrb[0].mxu0
  %v956 = vpop.f32.mrb[0].mxu0
  %v957 = vadd.f32 %v860, %v956
  %v958 = vpop.f32.mrb[0].mxu0
  %959 = vmatprep.mubr.bf16.mxu0 %v392
  %960 = vmatmul.mubr.bf16.gmra.mrb[0].mxu0 %v391
  %v961 = vpop.f32.mrb[0].mxu0
  %v962 = vadd.f32 %v865, %v961
  %v963 = vpop.f32.mrb[0].mxu0
  %v964 = vpop.f32.mrb[0].mxu0
  %v965 = vadd.f32 %v868, %v964
  %v966 = vpop.f32.mrb[0].mxu0
  %967 = vmatprep.mubr.bf16.mxu0 %v399
  %968 = vmatmul.mubr.bf16.gmra.mrb[0].mxu0 %v398
  %v969 = vpop.f32.mrb[0].mxu0
  %v970 = vadd.f32 %v873, %v969
  %v971 = vpop.f32.mrb[0].mxu0
  %v972 = vpop.f32.mrb[0].mxu0
  %v973 = vadd.f32 %v876, %v972
  %v974 = vpop.f32.mrb[0].mxu0
  %975 = vmatprep.mubr.bf16.mxu0 %v406
  %976 = vmatmul.mubr.bf16.gmra.mrb[0].mxu0 %v405
  %v977 = vpop.f32.mrb[0].mxu0
  %v978 = vadd.f32 %v881, %v977
  %v979 = vpop.f32.mrb[0].mxu0
  %v980 = vpop.f32.mrb[0].mxu0
  %v981 = vadd.f32 %v884, %v980
  %v982 = vpop.f32.mrb[0].mxu0
  %983 = vmatprep.mubr.bf16.mxu0 %v413
  %984 = vmatmul.mubr.bf16.gmra.mrb[0].mxu0 %v412
  %v985 = vpop.f32.mrb[0].mxu0
  %v986 = vadd.f32 %v889, %v985
  %v987 = vpop.f32.mrb[0].mxu0
  %v988 = vpop.f32.mrb[0].mxu0
  %v989 = vadd.f32 %v892, %v988
  %v990 = vpop.f32.mrb[0].mxu0
  %991 = vmatprep.mubr.bf16.mxu0 %v420
  %992 = vmatmul.mubr.bf16.gmra.mrb[0].mxu0 %v419
  %v993 = vpop.f32.mrb[0].mxu0
  %v994 = vadd.f32 %v897, %v993
  %v995 = vpop.f32.mrb[0].mxu0
  %v996 = vpop.f32.mrb[0].mxu0
  %v997 = vadd.f32 %v900, %v996
  %v998 = vpop.f32.mrb[0].mxu0
  %999 = vdwg.mxu0
  %1000 = vmatprep.subr.bf16.mxu0 0
  %1001 = vmatpush1.bf16.msra.mxu0 %v708
  %1002 = vmatprep.subr.bf16.mxu0 0
  %1003 = vmatpush1.bf16.msra.mxu0 %v709
  %1004 = vmatprep.subr.bf16.mxu0 0
  %1005 = vmatpush1.bf16.msra.mxu0 %v710
  %1006 = vmatprep.subr.bf16.mxu0 0
  %1007 = vmatpush1.bf16.msra.mxu0 %v711
  %1008 = vmatprep.subr.bf16.mxu0 0
  %1009 = vmatpush1.bf16.msra.mxu0 %v712
  %1010 = vmatprep.subr.bf16.mxu0 0
  %1011 = vmatpush1.bf16.msra.mxu0 %v713
  %1012 = vmatprep.subr.bf16.mxu0 0
  %1013 = vmatpush1.bf16.msra.mxu0 %v714
  %1014 = vmatprep.subr.bf16.mxu0 0
  %1015 = vmatpush1.bf16.msra.mxu0 %v715
  %1016 = vmatprep.subr.bf16.mxu0 0
  %1017 = vmatpush1.bf16.msra.mxu0 %v716
  %1018 = vmatprep.subr.bf16.mxu0 0
  %1019 = vmatpush1.bf16.msra.mxu0 %v717
  %1020 = vmatprep.subr.bf16.mxu0 0
  %1021 = vmatpush1.bf16.msra.mxu0 %v718
  %1022 = vmatprep.subr.bf16.mxu0 0
  %1023 = vmatpush1.bf16.msra.mxu0 %v719
  %1024 = vmatprep.subr.bf16.mxu0 0
  %1025 = vmatpush1.bf16.msra.mxu0 %v720
  %1026 = vmatprep.subr.bf16.mxu0 0
  %1027 = vmatpush1.bf16.msra.mxu0 %v721
  %1028 = vmatprep.subr.bf16.mxu0 0
  %1029 = vmatpush1.bf16.msra.mxu0 %v722
  %1030 = vmatprep.subr.bf16.mxu0 0
  %1031 = vmatpush1.bf16.msra.mxu0 %v723
  %1032 = vmatprep.mubr.bf16.mxu0 %v373
  %1033 = vmatmul.mubr.bf16.gmra.mrb[0].mxu0 %v372
  %v1034 = vpop.f32.mrb[0].mxu0
  %v1035 = vadd.f32 %v938, %v1034
  %v1036 = vpop.f32.mrb[0].mxu0
  %v1037 = vpop.f32.mrb[0].mxu0
  %v1038 = vadd.f32 %v941, %v1037
  %v1039 = vpop.f32.mrb[0].mxu0
  %1040 = vmatprep.mubr.bf16.mxu0 %v380
  %1041 = vmatmul.mubr.bf16.gmra.mrb[0].mxu0 %v379
  %v1042 = vpop.f32.mrb[0].mxu0
  %v1043 = vadd.f32 %v946, %v1042
  %v1044 = vpop.f32.mrb[0].mxu0
  %v1045 = vpop.f32.mrb[0].mxu0
  %v1046 = vadd.f32 %v949, %v1045
  %v1047 = vpop.f32.mrb[0].mxu0
  %1048 = vmatprep.mubr.bf16.mxu0 %v387
  %1049 = vmatmul.mubr.bf16.gmra.mrb[0].mxu0 %v386
  %v1050 = vpop.f32.mrb[0].mxu0
  %v1051 = vadd.f32 %v954, %v1050
  %v1052 = vpop.f32.mrb[0].mxu0
  %v1053 = vpop.f32.mrb[0].mxu0
  %v1054 = vadd.f32 %v957, %v1053
  %v1055 = vpop.f32.mrb[0].mxu0
  %1056 = vmatprep.mubr.bf16.mxu0 %v394
  %1057 = vmatmul.mubr.bf16.gmra.mrb[0].mxu0 %v393
  %v1058 = vpop.f32.mrb[0].mxu0
  %v1059 = vadd.f32 %v962, %v1058
  %v1060 = vpop.f32.mrb[0].mxu0
  %v1061 = vpop.f32.mrb[0].mxu0
  %v1062 = vadd.f32 %v965, %v1061
  %v1063 = vpop.f32.mrb[0].mxu0
  %1064 = vmatprep.mubr.bf16.mxu0 %v401
  %1065 = vmatmul.mubr.bf16.gmra.mrb[0].mxu0 %v400
  %v1066 = vpop.f32.mrb[0].mxu0
  %v1067 = vadd.f32 %v970, %v1066
  %v1068 = vpop.f32.mrb[0].mxu0
  %v1069 = vpop.f32.mrb[0].mxu0
  %v1070 = vadd.f32 %v973, %v1069
  %v1071 = vpop.f32.mrb[0].mxu0
  %1072 = vmatprep.mubr.bf16.mxu0 %v408
  %1073 = vmatmul.mubr.bf16.gmra.mrb[0].mxu0 %v407
  %v1074 = vpop.f32.mrb[0].mxu0
  %v1075 = vadd.f32 %v978, %v1074
  %v1076 = vpop.f32.mrb[0].mxu0
  %v1077 = vpop.f32.mrb[0].mxu0
  %v1078 = vadd.f32 %v981, %v1077
  %v1079 = vpop.f32.mrb[0].mxu0
  %1080 = vmatprep.mubr.bf16.mxu0 %v415
  %1081 = vmatmul.mubr.bf16.gmra.mrb[0].mxu0 %v414
  %v1082 = vpop.f32.mrb[0].mxu0
  %v1083 = vadd.f32 %v986, %v1082
  %v1084 = vpop.f32.mrb[0].mxu0
  %v1085 = vpop.f32.mrb[0].mxu0
  %v1086 = vadd.f32 %v989, %v1085
  %v1087 = vpop.f32.mrb[0].mxu0
  %1088 = vmatprep.mubr.bf16.mxu0 %v422
  %1089 = vmatmul.mubr.bf16.gmra.mrb[0].mxu0 %v421
  %v1090 = vpop.f32.mrb[0].mxu0
  %v1091 = vadd.f32 %v994, %v1090
  %v1092 = vpop.f32.mrb[0].mxu0
  %v1093 = vpop.f32.mrb[0].mxu0
  %v1094 = vadd.f32 %v997, %v1093
  %v1095 = vpop.f32.mrb[0].mxu0
  %1096 = vdwg.mxu0
  %1097 = vmatprep.subr.bf16.mxu0 0
  %1098 = vmatpush1.bf16.msra.mxu0 %v724
  %1099 = vmatprep.subr.bf16.mxu0 0
  %1100 = vmatpush1.bf16.msra.mxu0 %v725
  %1101 = vmatprep.subr.bf16.mxu0 0
  %1102 = vmatpush1.bf16.msra.mxu0 %v804
  %1103 = vmatprep.subr.bf16.mxu0 0
  %1104 = vmatpush1.bf16.msra.mxu0 0
  %1105 = vmatprep.subr.bf16.mxu0 0
  %1106 = vmatpush1.bf16.msra.mxu0 0
  %1107 = vmatprep.subr.bf16.mxu0 0
  %1108 = vmatpush1.bf16.msra.mxu0 0
  %1109 = vmatprep.subr.bf16.mxu0 0
  %1110 = vmatpush1.bf16.msra.mxu0 0
  %1111 = vmatprep.subr.bf16.mxu0 0
  %1112 = vmatpush1.bf16.msra.mxu0 0
  %1113 = vmatprep.subr.bf16.mxu0 0
  %1114 = vmatpush1.bf16.msra.mxu0 0
  %1115 = vmatprep.subr.bf16.mxu0 0
  %1116 = vmatpush1.bf16.msra.mxu0 0
  %1117 = vmatprep.subr.bf16.mxu0 0
  %1118 = vmatpush1.bf16.msra.mxu0 0
  %1119 = vmatprep.subr.bf16.mxu0 0
  %1120 = vmatpush1.bf16.msra.mxu0 0
  %1121 = vmatprep.subr.bf16.mxu0 0
  %1122 = vmatpush1.bf16.msra.mxu0 0
  %1123 = vmatprep.subr.bf16.mxu0 0
  %1124 = vmatpush1.bf16.msra.mxu0 0
  %1125 = vmatprep.subr.bf16.mxu0 0
  %1126 = vmatpush1.bf16.msra.mxu0 0
  %1127 = vmatprep.subr.bf16.mxu0 0
  %1128 = vmatpush1.bf16.msra.mxu0 0
  %1129 = vmatprep.mubr.bf16.mxu0 0
  %1130 = vmatmul.mubr.bf16.gmra.mrb[0].mxu0 %v779
  %v1131 = vpop.f32.mrb[0].mxu0
  %v1132 = vadd.f32 %v1035, %v1131
  %v1133 = vpop.f32.mrb[0].mxu0
  %v1134 = vpop.f32.mrb[0].mxu0
  %v1135 = vadd.f32 %v1038, %v1134
  %v1136 = vpop.f32.mrb[0].mxu0
  %1137 = vmatprep.mubr.bf16.mxu0 0
  %1138 = vmatmul.mubr.bf16.gmra.mrb[0].mxu0 %v782
  %v1139 = vpop.f32.mrb[0].mxu0
  %v1140 = vadd.f32 %v1043, %v1139
  %v1141 = vpop.f32.mrb[0].mxu0
  %v1142 = vpop.f32.mrb[0].mxu0
  %v1143 = vadd.f32 %v1046, %v1142
  %v1144 = vpop.f32.mrb[0].mxu0
  %1145 = vmatprep.mubr.bf16.mxu0 0
  %1146 = vmatmul.mubr.bf16.gmra.mrb[0].mxu0 %v785
  %v1147 = vpop.f32.mrb[0].mxu0
  %v1148 = vadd.f32 %v1051, %v1147
  %v1149 = vpop.f32.mrb[0].mxu0
  %v1150 = vpop.f32.mrb[0].mxu0
  %v1151 = vadd.f32 %v1054, %v1150
  %v1152 = vpop.f32.mrb[0].mxu0
  %1153 = vmatprep.mubr.bf16.mxu0 0
  %1154 = vmatmul.mubr.bf16.gmra.mrb[0].mxu0 %v788
  %v1155 = vpop.f32.mrb[0].mxu0
  %v1156 = vadd.f32 %v1059, %v1155
  %v1157 = vpop.f32.mrb[0].mxu0
  %v1158 = vpop.f32.mrb[0].mxu0
  %v1159 = vadd.f32 %v1062, %v1158
  %v1160 = vpop.f32.mrb[0].mxu0
  %1161 = vmatprep.mubr.bf16.mxu0 0
  %1162 = vmatmul.mubr.bf16.gmra.mrb[0].mxu0 %v791
  %v1163 = vpop.f32.mrb[0].mxu0
  %v1164 = vadd.f32 %v1067, %v1163
  %v1165 = vpop.f32.mrb[0].mxu0
  %v1166 = vpop.f32.mrb[0].mxu0
  %v1167 = vadd.f32 %v1070, %v1166
  %v1168 = vpop.f32.mrb[0].mxu0
  %1169 = vmatprep.mubr.bf16.mxu0 0
  %1170 = vmatmul.mubr.bf16.gmra.mrb[0].mxu0 %v794
  %v1171 = vpop.f32.mrb[0].mxu0
  %v1172 = vadd.f32 %v1075, %v1171
  %v1173 = vpop.f32.mrb[0].mxu0
  %v1174 = vpop.f32.mrb[0].mxu0
  %v1175 = vadd.f32 %v1078, %v1174
  %v1176 = vpop.f32.mrb[0].mxu0
  %1177 = vmatprep.mubr.bf16.mxu0 0
  %1178 = vmatmul.mubr.bf16.gmra.mrb[0].mxu0 %v797
  %v1179 = vpop.f32.mrb[0].mxu0
  %v1180 = vadd.f32 %v1083, %v1179
  %v1181 = vpop.f32.mrb[0].mxu0
  %v1182 = vpop.f32.mrb[0].mxu0
  %v1183 = vadd.f32 %v1086, %v1182
  %v1184 = vpop.f32.mrb[0].mxu0
  %1185 = vmatprep.mubr.bf16.mxu0 0
  %1186 = vmatmul.mubr.bf16.gmra.mrb[0].mxu0 %v800
  %v1187 = vpop.f32.mrb[0].mxu0
  %v1188 = vadd.f32 %v1091, %v1187
  %v1189 = vpop.f32.mrb[0].mxu0
  %v1190 = vpop.f32.mrb[0].mxu0
  %v1191 = vadd.f32 %v1094, %v1190
  %v1192 = vpop.f32.mrb[0].mxu0
  %1193 = vdwg.mxu0
  %vm1194 = vcmp.ge.f32.partialorder %v1132, 0.0
  %vm1195 = vcmp.ge.f32.partialorder %v1135, 0.0
  %vm1196 = vcmp.ge.f32.partialorder %v1140, 0.0
  %vm1197 = vcmp.ge.f32.partialorder %v1143, 0.0
  %vm1198 = vcmp.ge.f32.partialorder %v1148, 0.0
  %vm1199 = vcmp.ge.f32.partialorder %v1151, 0.0
  %vm1200 = vcmp.ge.f32.partialorder %v1156, 0.0
  %vm1201 = vcmp.ge.f32.partialorder %v1159, 0.0
  %vm1202 = vcmp.ge.f32.partialorder %v1164, 0.0
  %vm1203 = vcmp.ge.f32.partialorder %v1167, 0.0
  %vm1204 = vcmp.ge.f32.partialorder %v1172, 0.0
  %vm1205 = vcmp.ge.f32.partialorder %v1175, 0.0
  %vm1206 = vcmp.ge.f32.partialorder %v1180, 0.0
  %vm1207 = vcmp.ge.f32.partialorder %v1183, 0.0
  %vm1208 = vcmp.ge.f32.partialorder %v1188, 0.0
  %vm1209 = vcmp.ge.f32.partialorder %v1191, 0.0
  %v1210 = vmul.f32 %v1132, 0.01
  %v1211 = vmul.f32 %v1135, 0.01
  %v1212 = vmul.f32 %v1140, 0.01
  %v1213 = vmul.f32 %v1143, 0.01
  %v1214 = vmul.f32 %v1148, 0.01
  %v1215 = vmul.f32 %v1151, 0.01
  %v1216 = vmul.f32 %v1156, 0.01
  %v1217 = vmul.f32 %v1159, 0.01
  %v1218 = vmul.f32 %v1164, 0.01
  %v1219 = vmul.f32 %v1167, 0.01
  %v1220 = vmul.f32 %v1172, 0.01
  %v1221 = vmul.f32 %v1175, 0.01
  %v1222 = vmul.f32 %v1180, 0.01
  %v1223 = vmul.f32 %v1183, 0.01
  %v1224 = vmul.f32 %v1188, 0.01
  %v1225 = vmul.f32 %v1191, 0.01
  %v1226 = vsel %vm1194, %v1132, %v1210
  %v1227 = vsel %vm1195, %v1135, %v1211
  %v1228 = vsel %vm1196, %v1140, %v1212
  %v1229 = vsel %vm1197, %v1143, %v1213
  %v1230 = vsel %vm1198, %v1148, %v1214
  %v1231 = vsel %vm1199, %v1151, %v1215
  %v1232 = vsel %vm1200, %v1156, %v1216
  %v1233 = vsel %vm1201, %v1159, %v1217
  %v1234 = vsel %vm1202, %v1164, %v1218
  %v1235 = vsel %vm1203, %v1167, %v1219
  %v1236 = vsel %vm1204, %v1172, %v1220
  %v1237 = vsel %vm1205, %v1175, %v1221
  %v1238 = vsel %vm1206, %v1180, %v1222
  %v1239 = vsel %vm1207, %v1183, %v1223
  %v1240 = vsel %vm1208, %v1188, %v1224
  %v1241 = vsel %vm1209, %v1191, %v1225
  %v1242 = vld [vmem:[%s2 + $0x1] sm:$0x1]
  %v1243 = vlaneseq
  %v1244 = vshrl.u32 %v1243, 7
  %v1245 = vsub.s32 0, %v1244
  %v1246 = vrot.slane %v1242, %v1245
  %v1247 = vmul.f32 %v1226, %v1246
  %v1248 = vmul.f32 %v1227, %v1246
  %v1249 = vmul.f32 %v1228, %v1246
  %v1250 = vmul.f32 %v1229, %v1246
  %v1251 = vmul.f32 %v1230, %v1246
  %v1252 = vmul.f32 %v1231, %v1246
  %v1253 = vmul.f32 %v1232, %v1246
  %v1254 = vmul.f32 %v1233, %v1246
  %v1255 = vmul.f32 %v1234, %v1246
  %v1256 = vmul.f32 %v1235, %v1246
  %v1257 = vmul.f32 %v1236, %v1246
  %v1258 = vmul.f32 %v1237, %v1246
  %v1259 = vmul.f32 %v1238, %v1246
  %v1260 = vmul.f32 %v1239, %v1246
  %v1261 = vmul.f32 %v1240, %v1246
  %v1262 = vmul.f32 %v1241, %v1246
  %v1263 = vld [vmem:[%s2 + $0x2] sm:$0x1]
  %v1264 = vlaneseq
  %v1265 = vshrl.u32 %v1264, 7
  %v1266 = vsub.s32 0, %v1265
  %v1267 = vrot.slane %v1263, %v1266
  %v1268 = vadd.f32 %v1247, %v1267
  %v1269 = vadd.f32 %v1248, %v1267
  %v1270 = vadd.f32 %v1249, %v1267
  %v1271 = vadd.f32 %v1250, %v1267
  %v1272 = vadd.f32 %v1251, %v1267
  %v1273 = vadd.f32 %v1252, %v1267
  %v1274 = vadd.f32 %v1253, %v1267
  %v1275 = vadd.f32 %v1254, %v1267
  %v1276 = vadd.f32 %v1255, %v1267
  %v1277 = vadd.f32 %v1256, %v1267
  %v1278 = vadd.f32 %v1257, %v1267
  %v1279 = vadd.f32 %v1258, %v1267
  %v1280 = vadd.f32 %v1259, %v1267
  %v1281 = vadd.f32 %v1260, %v1267
  %v1282 = vadd.f32 %v1261, %v1267
  %v1283 = vadd.f32 %v1262, %v1267
  %v1284 = vld [vmem:[%s3] sm:$0xff]
  %v1285 = vld [vmem:[%s3 + $0x8] sm:$0xff]
  %v1286 = vld [vmem:[%s3 + $0x10] sm:$0xff]
  %v1287 = vld [vmem:[%s3 + $0x18] sm:$0xff]
  %v1288 = vld [vmem:[%s3 + $0x20] sm:$0xff]
  %v1289 = vld [vmem:[%s3 + $0x28] sm:$0xff]
  %v1290 = vld [vmem:[%s3 + $0x30] sm:$0xff]
  %v1291 = vld [vmem:[%s3 + $0x38] sm:$0xff]
  %v1292 = vld [vmem:[%s3 + $0x40] sm:$0xff]
  %v1293 = vld [vmem:[%s3 + $0x48] sm:$0xff]
  %v1294 = vld [vmem:[%s3 + $0x50] sm:$0xff]
  %v1295 = vld [vmem:[%s3 + $0x58] sm:$0xff]
  %v1296 = vld [vmem:[%s3 + $0x60] sm:$0xff]
  %v1297 = vld [vmem:[%s3 + $0x68] sm:$0xff]
  %v1298 = vld [vmem:[%s3 + $0x70] sm:$0xff]
  %v1299 = vld [vmem:[%s3 + $0x78] sm:$0xff]
  %v1300 = vld [vmem:[%s3 + $0x80] sm:$0xff]
  %v1301 = vld [vmem:[%s3 + $0x88] sm:$0xff]
  %v1302 = vld [vmem:[%s3 + $0x90] sm:$0xff]
  %v1303 = vld [vmem:[%s3 + $0x98] sm:$0xff]
  %v1304 = vld [vmem:[%s3 + $0xa0] sm:$0xff]
  %v1305 = vld [vmem:[%s3 + $0xa8] sm:$0xff]
  %v1306 = vld [vmem:[%s3 + $0xb0] sm:$0xff]
  %v1307 = vld [vmem:[%s3 + $0xb8] sm:$0xff]
  %v1308 = vld [vmem:[%s3 + $0xc0] sm:$0xff]
  %v1309 = vld [vmem:[%s3 + $0xc8] sm:$0xff]
  %v1310 = vld [vmem:[%s3 + $0xd0] sm:$0xff]
  %v1311 = vld [vmem:[%s3 + $0xd8] sm:$0xff]
  %v1312 = vld [vmem:[%s3 + $0xe0] sm:$0xff]
  %v1313 = vld [vmem:[%s3 + $0xe8] sm:$0xff]
  %v1314 = vld [vmem:[%s3 + $0xf0] sm:$0xff]
  %v1315 = vld [vmem:[%s3 + $0xf8] sm:$0xff]
  %v1316 = vld [vmem:[%s3 + $0x100] sm:$0xff]
  %v1317 = vld [vmem:[%s3 + $0x108] sm:$0xff]
  %v1318 = vld [vmem:[%s3 + $0x110] sm:$0xff]
  %v1319 = vld [vmem:[%s3 + $0x118] sm:$0xff]
  %v1320 = vld [vmem:[%s3 + $0x120] sm:$0xff]
  %v1321 = vld [vmem:[%s3 + $0x128] sm:$0xff]
  %v1322 = vld [vmem:[%s3 + $0x130] sm:$0xff]
  %v1323 = vld [vmem:[%s3 + $0x138] sm:$0xff]
  %v1324 = vmul.f32 %v1284, %v1268
  %v1325 = vmul.f32 %v1285, %v1269
  %v1326 = vmul.f32 %v1286, %v1270
  %v1327 = vmul.f32 %v1287, %v1271
  %v1328 = vmul.f32 %v1288, %v1272
  %v1329 = vmul.f32 %v1289, %v1273
  %v1330 = vmul.f32 %v1290, %v1274
  %v1331 = vmul.f32 %v1291, %v1275
  %v1332 = vmul.f32 %v1292, %v1268
  %v1333 = vmul.f32 %v1293, %v1269
  %v1334 = vmul.f32 %v1294, %v1270
  %v1335 = vmul.f32 %v1295, %v1271
  %v1336 = vmul.f32 %v1296, %v1272
  %v1337 = vmul.f32 %v1297, %v1273
  %v1338 = vmul.f32 %v1298, %v1274
  %v1339 = vmul.f32 %v1299, %v1275
  %v1340 = vmul.f32 %v1300, %v1268
  %v1341 = vmul.f32 %v1301, %v1269
  %v1342 = vmul.f32 %v1302, %v1270
  %v1343 = vmul.f32 %v1303, %v1271
  %v1344 = vmul.f32 %v1304, %v1272
  %v1345 = vmul.f32 %v1305, %v1273
  %v1346 = vmul.f32 %v1306, %v1274
  %v1347 = vmul.f32 %v1307, %v1275
  %v1348 = vmul.f32 %v1308, %v1268
  %v1349 = vmul.f32 %v1309, %v1269
  %v1350 = vmul.f32 %v1310, %v1270
  %v1351 = vmul.f32 %v1311, %v1271
  %v1352 = vmul.f32 %v1312, %v1272
  %v1353 = vmul.f32 %v1313, %v1273
  %v1354 = vmul.f32 %v1314, %v1274
  %v1355 = vmul.f32 %v1315, %v1275
  %v1356 = vmul.f32 %v1316, %v1268
  %v1357 = vmul.f32 %v1317, %v1269
  %v1358 = vmul.f32 %v1318, %v1270
  %v1359 = vmul.f32 %v1319, %v1271
  %v1360 = vmul.f32 %v1320, %v1272
  %v1361 = vmul.f32 %v1321, %v1273
  %v1362 = vmul.f32 %v1322, %v1274
  %v1363 = vmul.f32 %v1323, %v1275
  %1364 = vadd.xlane.f32.xlu0 %v1324
  %v1365 = vpop.xlane.xlu0 %1364
  %1366 = vadd.xlane.f32.xlu0 %v1325
  %v1367 = vpop.xlane.xlu0 %1366
  %1368 = vadd.xlane.f32.xlu0 %v1326
  %v1369 = vpop.xlane.xlu0 %1368
  %1370 = vadd.xlane.f32.xlu0 %v1327
  %v1371 = vpop.xlane.xlu0 %1370
  %1372 = vadd.xlane.f32.xlu0 %v1328
  %v1373 = vpop.xlane.xlu0 %1372
  %1374 = vadd.xlane.f32.xlu0 %v1329
  %v1375 = vpop.xlane.xlu0 %1374
  %1376 = vadd.xlane.f32.xlu0 %v1330
  %v1377 = vpop.xlane.xlu0 %1376
  %1378 = vadd.xlane.f32.xlu0 %v1331
  %v1379 = vpop.xlane.xlu0 %1378
  %1380 = vadd.xlane.f32.xlu0 %v1332
  %v1381 = vpop.xlane.xlu0 %1380
  %1382 = vadd.xlane.f32.xlu0 %v1333
  %v1383 = vpop.xlane.xlu0 %1382
  %1384 = vadd.xlane.f32.xlu0 %v1334
  %v1385 = vpop.xlane.xlu0 %1384
  %1386 = vadd.xlane.f32.xlu0 %v1335
  %v1387 = vpop.xlane.xlu0 %1386
  %1388 = vadd.xlane.f32.xlu0 %v1336
  %v1389 = vpop.xlane.xlu0 %1388
  %1390 = vadd.xlane.f32.xlu0 %v1337
  %v1391 = vpop.xlane.xlu0 %1390
  %1392 = vadd.xlane.f32.xlu0 %v1338
  %v1393 = vpop.xlane.xlu0 %1392
  %1394 = vadd.xlane.f32.xlu0 %v1339
  %v1395 = vpop.xlane.xlu0 %1394
  %1396 = vadd.xlane.f32.xlu0 %v1340
  %v1397 = vpop.xlane.xlu0 %1396
  %1398 = vadd.xlane.f32.xlu0 %v1341
  %v1399 = vpop.xlane.xlu0 %1398
  %1400 = vadd.xlane.f32.xlu0 %v1342
  %v1401 = vpop.xlane.xlu0 %1400
  %1402 = vadd.xlane.f32.xlu0 %v1343
  %v1403 = vpop.xlane.xlu0 %1402
  %1404 = vadd.xlane.f32.xlu0 %v1344
  %v1405 = vpop.xlane.xlu0 %1404
  %1406 = vadd.xlane.f32.xlu0 %v1345
  %v1407 = vpop.xlane.xlu0 %1406
  %1408 = vadd.xlane.f32.xlu0 %v1346
  %v1409 = vpop.xlane.xlu0 %1408
  %1410 = vadd.xlane.f32.xlu0 %v1347
  %v1411 = vpop.xlane.xlu0 %1410
  %1412 = vadd.xlane.f32.xlu0 %v1348
  %v1413 = vpop.xlane.xlu0 %1412
  %1414 = vadd.xlane.f32.xlu0 %v1349
  %v1415 = vpop.xlane.xlu0 %1414
  %1416 = vadd.xlane.f32.xlu0 %v1350
  %v1417 = vpop.xlane.xlu0 %1416
  %1418 = vadd.xlane.f32.xlu0 %v1351
  %v1419 = vpop.xlane.xlu0 %1418
  %1420 = vadd.xlane.f32.xlu0 %v1352
  %v1421 = vpop.xlane.xlu0 %1420
  %1422 = vadd.xlane.f32.xlu0 %v1353
  %v1423 = vpop.xlane.xlu0 %1422
  %1424 = vadd.xlane.f32.xlu0 %v1354
  %v1425 = vpop.xlane.xlu0 %1424
  %1426 = vadd.xlane.f32.xlu0 %v1355
  %v1427 = vpop.xlane.xlu0 %1426
  %1428 = vadd.xlane.f32.xlu0 %v1356
  %v1429 = vpop.xlane.xlu0 %1428
  %1430 = vadd.xlane.f32.xlu0 %v1357
  %v1431 = vpop.xlane.xlu0 %1430
  %1432 = vadd.xlane.f32.xlu0 %v1358
  %v1433 = vpop.xlane.xlu0 %1432
  %1434 = vadd.xlane.f32.xlu0 %v1359
  %v1435 = vpop.xlane.xlu0 %1434
  %1436 = vadd.xlane.f32.xlu0 %v1360
  %v1437 = vpop.xlane.xlu0 %1436
  %1438 = vadd.xlane.f32.xlu0 %v1361
  %v1439 = vpop.xlane.xlu0 %1438
  %1440 = vadd.xlane.f32.xlu0 %v1362
  %v1441 = vpop.xlane.xlu0 %1440
  %1442 = vadd.xlane.f32.xlu0 %v1363
  %v1443 = vpop.xlane.xlu0 %1442
  %v1484 = vlaneseq
  %v1485 = vand.u32 %v1484, 127
  %v1486 = vlaneseq
  %v1487 = vshrl.u32 %v1486, 7
  %v1488 = vsub.s32 %v1485, %v1487
  %v1489 = vrot.slane %v1365, %v1488
  %v1490 = vadd.s32 %v1485, 4294967288
  %v1491 = vlaneseq
  %v1492 = vshrl.u32 %v1491, 7
  %v1493 = vsub.s32 %v1490, %v1492
  %v1494 = vrot.slane %v1367, %v1493
  %vm1495 = vcmask 130112
  %v1496 = vsel %vm1495, %v1494, %v1489
  %v1497 = vadd.s32 %v1485, 4294967280
  %v1498 = vlaneseq
  %v1499 = vshrl.u32 %v1498, 7
  %v1500 = vsub.s32 %v1497, %v1499
  %v1501 = vrot.slane %v1369, %v1500
  %vm1502 = vcmask 195712
  %v1503 = vsel %vm1502, %v1501, %v1496
  %v1504 = vadd.s32 %v1485, 4294967272
  %v1505 = vlaneseq
  %v1506 = vshrl.u32 %v1505, 7
  %v1507 = vsub.s32 %v1504, %v1506
  %v1508 = vrot.slane %v1371, %v1507
  %vm1509 = vcmask 261312
  %v1510 = vsel %vm1509, %v1508, %v1503
  %v1511 = vadd.s32 %v1485, 4294967264
  %v1512 = vlaneseq
  %v1513 = vshrl.u32 %v1512, 7
  %v1514 = vsub.s32 %v1511, %v1513
  %v1515 = vrot.slane %v1373, %v1514
  %vm1516 = vcmask 326912
  %v1517 = vsel %vm1516, %v1515, %v1510
  %v1518 = vadd.s32 %v1485, 4294967256
  %v1519 = vlaneseq
  %v1520 = vshrl.u32 %v1519, 7
  %v1521 = vsub.s32 %v1518, %v1520
  %v1522 = vrot.slane %v1375, %v1521
  %vm1523 = vcmask 392512
  %v1524 = vsel %vm1523, %v1522, %v1517
  %v1525 = vadd.s32 %v1485, 4294967248
  %v1526 = vlaneseq
  %v1527 = vshrl.u32 %v1526, 7
  %v1528 = vsub.s32 %v1525, %v1527
  %v1529 = vrot.slane %v1377, %v1528
  %vm1530 = vcmask 458112
  %v1531 = vsel %vm1530, %v1529, %v1524
  %v1532 = vadd.s32 %v1485, 4294967240
  %v1533 = vlaneseq
  %v1534 = vshrl.u32 %v1533, 7
  %v1535 = vsub.s32 %v1532, %v1534
  %v1536 = vrot.slane %v1379, %v1535
  %vm1537 = vcmask 523712
  %v1538 = vsel %vm1537, %v1536, %v1531
  %v1539 = vlaneseq
  %v1540 = vshrl.u32 %v1539, 7
  %v1541 = vsub.s32 %v1485, %v1540
  %v1542 = vrot.slane %v1381, %v1541
  %v1543 = vlaneseq
  %v1544 = vshrl.u32 %v1543, 7
  %v1545 = vsub.s32 %v1490, %v1544
  %v1546 = vrot.slane %v1383, %v1545
  %v1547 = vsel %vm1495, %v1546, %v1542
  %v1548 = vlaneseq
  %v1549 = vshrl.u32 %v1548, 7
  %v1550 = vsub.s32 %v1497, %v1549
  %v1551 = vrot.slane %v1385, %v1550
  %v1552 = vsel %vm1502, %v1551, %v1547
  %v1553 = vlaneseq
  %v1554 = vshrl.u32 %v1553, 7
  %v1555 = vsub.s32 %v1504, %v1554
  %v1556 = vrot.slane %v1387, %v1555
  %v1557 = vsel %vm1509, %v1556, %v1552
  %v1558 = vlaneseq
  %v1559 = vshrl.u32 %v1558, 7
  %v1560 = vsub.s32 %v1511, %v1559
  %v1561 = vrot.slane %v1389, %v1560
  %v1562 = vsel %vm1516, %v1561, %v1557
  %v1563 = vlaneseq
  %v1564 = vshrl.u32 %v1563, 7
  %v1565 = vsub.s32 %v1518, %v1564
  %v1566 = vrot.slane %v1391, %v1565
  %v1567 = vsel %vm1523, %v1566, %v1562
  %v1568 = vlaneseq
  %v1569 = vshrl.u32 %v1568, 7
  %v1570 = vsub.s32 %v1525, %v1569
  %v1571 = vrot.slane %v1393, %v1570
  %v1572 = vsel %vm1530, %v1571, %v1567
  %v1573 = vlaneseq
  %v1574 = vshrl.u32 %v1573, 7
  %v1575 = vsub.s32 %v1532, %v1574
  %v1576 = vrot.slane %v1395, %v1575
  %v1577 = vsel %vm1537, %v1576, %v1572
  %v1578 = vlaneseq
  %v1579 = vshrl.u32 %v1578, 7
  %v1580 = vsub.s32 %v1485, %v1579
  %v1581 = vrot.slane %v1397, %v1580
  %v1582 = vlaneseq
  %v1583 = vshrl.u32 %v1582, 7
  %v1584 = vsub.s32 %v1490, %v1583
  %v1585 = vrot.slane %v1399, %v1584
  %v1586 = vsel %vm1495, %v1585, %v1581
  %v1587 = vlaneseq
  %v1588 = vshrl.u32 %v1587, 7
  %v1589 = vsub.s32 %v1497, %v1588
  %v1590 = vrot.slane %v1401, %v1589
  %v1591 = vsel %vm1502, %v1590, %v1586
  %v1592 = vlaneseq
  %v1593 = vshrl.u32 %v1592, 7
  %v1594 = vsub.s32 %v1504, %v1593
  %v1595 = vrot.slane %v1403, %v1594
  %v1596 = vsel %vm1509, %v1595, %v1591
  %v1597 = vlaneseq
  %v1598 = vshrl.u32 %v1597, 7
  %v1599 = vsub.s32 %v1511, %v1598
  %v1600 = vrot.slane %v1405, %v1599
  %v1601 = vsel %vm1516, %v1600, %v1596
  %v1602 = vlaneseq
  %v1603 = vshrl.u32 %v1602, 7
  %v1604 = vsub.s32 %v1518, %v1603
  %v1605 = vrot.slane %v1407, %v1604
  %v1606 = vsel %vm1523, %v1605, %v1601
  %v1607 = vlaneseq
  %v1608 = vshrl.u32 %v1607, 7
  %v1609 = vsub.s32 %v1525, %v1608
  %v1610 = vrot.slane %v1409, %v1609
  %v1611 = vsel %vm1530, %v1610, %v1606
  %v1612 = vlaneseq
  %v1613 = vshrl.u32 %v1612, 7
  %v1614 = vsub.s32 %v1532, %v1613
  %v1615 = vrot.slane %v1411, %v1614
  %v1616 = vsel %vm1537, %v1615, %v1611
  %v1617 = vlaneseq
  %v1618 = vshrl.u32 %v1617, 7
  %v1619 = vsub.s32 %v1485, %v1618
  %v1620 = vrot.slane %v1413, %v1619
  %v1621 = vlaneseq
  %v1622 = vshrl.u32 %v1621, 7
  %v1623 = vsub.s32 %v1490, %v1622
  %v1624 = vrot.slane %v1415, %v1623
  %v1625 = vsel %vm1495, %v1624, %v1620
  %v1626 = vlaneseq
  %v1627 = vshrl.u32 %v1626, 7
  %v1628 = vsub.s32 %v1497, %v1627
  %v1629 = vrot.slane %v1417, %v1628
  %v1630 = vsel %vm1502, %v1629, %v1625
  %v1631 = vlaneseq
  %v1632 = vshrl.u32 %v1631, 7
  %v1633 = vsub.s32 %v1504, %v1632
  %v1634 = vrot.slane %v1419, %v1633
  %v1635 = vsel %vm1509, %v1634, %v1630
  %v1636 = vlaneseq
  %v1637 = vshrl.u32 %v1636, 7
  %v1638 = vsub.s32 %v1511, %v1637
  %v1639 = vrot.slane %v1421, %v1638
  %v1640 = vsel %vm1516, %v1639, %v1635
  %v1641 = vlaneseq
  %v1642 = vshrl.u32 %v1641, 7
  %v1643 = vsub.s32 %v1518, %v1642
  %v1644 = vrot.slane %v1423, %v1643
  %v1645 = vsel %vm1523, %v1644, %v1640
  %v1646 = vlaneseq
  %v1647 = vshrl.u32 %v1646, 7
  %v1648 = vsub.s32 %v1525, %v1647
  %v1649 = vrot.slane %v1425, %v1648
  %v1650 = vsel %vm1530, %v1649, %v1645
  %v1651 = vlaneseq
  %v1652 = vshrl.u32 %v1651, 7
  %v1653 = vsub.s32 %v1532, %v1652
  %v1654 = vrot.slane %v1427, %v1653
  %v1655 = vsel %vm1537, %v1654, %v1650
  %v1656 = vlaneseq
  %v1657 = vshrl.u32 %v1656, 7
  %v1658 = vsub.s32 %v1485, %v1657
  %v1659 = vrot.slane %v1429, %v1658
  %v1660 = vlaneseq
  %v1661 = vshrl.u32 %v1660, 7
  %v1662 = vsub.s32 %v1490, %v1661
  %v1663 = vrot.slane %v1431, %v1662
  %v1664 = vsel %vm1495, %v1663, %v1659
  %v1665 = vlaneseq
  %v1666 = vshrl.u32 %v1665, 7
  %v1667 = vsub.s32 %v1497, %v1666
  %v1668 = vrot.slane %v1433, %v1667
  %v1669 = vsel %vm1502, %v1668, %v1664
  %v1670 = vlaneseq
  %v1671 = vshrl.u32 %v1670, 7
  %v1672 = vsub.s32 %v1504, %v1671
  %v1673 = vrot.slane %v1435, %v1672
  %v1674 = vsel %vm1509, %v1673, %v1669
  %v1675 = vlaneseq
  %v1676 = vshrl.u32 %v1675, 7
  %v1677 = vsub.s32 %v1511, %v1676
  %v1678 = vrot.slane %v1437, %v1677
  %v1679 = vsel %vm1516, %v1678, %v1674
  %v1680 = vlaneseq
  %v1681 = vshrl.u32 %v1680, 7
  %v1682 = vsub.s32 %v1518, %v1681
  %v1683 = vrot.slane %v1439, %v1682
  %v1684 = vsel %vm1523, %v1683, %v1679
  %v1685 = vlaneseq
  %v1686 = vshrl.u32 %v1685, 7
  %v1687 = vsub.s32 %v1525, %v1686
  %v1688 = vrot.slane %v1441, %v1687
  %v1689 = vsel %vm1530, %v1688, %v1684
  %v1690 = vlaneseq
  %v1691 = vshrl.u32 %v1690, 7
  %v1692 = vsub.s32 %v1532, %v1691
  %v1693 = vrot.slane %v1443, %v1692
  %v1694 = vsel %vm1537, %v1693, %v1689
  %vm1695 = vcmask 1041409
  %v1696 = vsel %vm1695, %v1577, %v1538
  %vm1697 = vcmask 1042434
  %v1698 = vsel %vm1697, %v1616, %v1696
  %vm1699 = vcmask 1043459
  %v1700 = vsel %vm1699, %v1655, %v1698
  %vm1701 = vcmask 1044484
  %v1702 = vsel %vm1701, %v1694, %v1700
  %vm1704 = vcmask 520192
  %v1705 = vsel %vm1704, %v1702, 0.0
  %1706 = vadd.xlane.f32.xlu0 %v1705
  %v1707 = vpop.xlane.xlu0 %1706
  %v1708 = vld [vmem:[%s4] sm:$0x1f]
  %v1709 = vadd.f32 %v1707, %v1708
  %vm1710 = vcmp.ge.f32.partialorder %v1709, 0.0
  %v1711 = vmul.f32 %v1709, 0.01
  %v1712 = vsel %vm1710, %v1709, %v1711
  %vm1713 = vcmask 4096
  %v1714 = vsel %vm1713, %v1712, -inf
  %v1715 = vrot.slane %v1714, 4
  %v1716 = vmax.f32 %v1714, %v1715
  %v1717 = vrot.slane %v1716, 2
  %v1718 = vmax.f32 %v1716, %v1717
  %v1719 = vrot.slane %v1718, 1
  %v1720 = vmax.f32 %v1718, %v1719
  %v1721 = vsub.f32 %v1712, %v1720
  %v1722 = vmul.f32 %v1721, 1.442695
  %v1723 = vpow.pop %v1722
  %v1724 = vsel %vm1713, %v1723, 0.0
  %v1725 = vrot.slane %v1724, 4
  %v1726 = vadd.f32 %v1724, %v1725
  %v1727 = vrot.slane %v1726, 2
  %v1728 = vadd.f32 %v1726, %v1727
  %v1729 = vrot.slane %v1728, 1
  %v1730 = vadd.f32 %v1728, %v1729
  %v1731 = vrcp.pop %v1730
  %v1732 = vmul.f32 %v1723, %v1731
  %1733 = vst.msk [vmem:[%s5] sm:$0x1f] %vm1713, %v1732
  %v1734 = vmul.f32 %v1284, %v1276
  %v1735 = vmul.f32 %v1285, %v1277
  %v1736 = vmul.f32 %v1286, %v1278
  %v1737 = vmul.f32 %v1287, %v1279
  %v1738 = vmul.f32 %v1288, %v1280
  %v1739 = vmul.f32 %v1289, %v1281
  %v1740 = vmul.f32 %v1290, %v1282
  %v1741 = vmul.f32 %v1291, %v1283
  %v1742 = vmul.f32 %v1292, %v1276
  %v1743 = vmul.f32 %v1293, %v1277
  %v1744 = vmul.f32 %v1294, %v1278
  %v1745 = vmul.f32 %v1295, %v1279
  %v1746 = vmul.f32 %v1296, %v1280
  %v1747 = vmul.f32 %v1297, %v1281
  %v1748 = vmul.f32 %v1298, %v1282
  %v1749 = vmul.f32 %v1299, %v1283
  %v1750 = vmul.f32 %v1300, %v1276
  %v1751 = vmul.f32 %v1301, %v1277
  %v1752 = vmul.f32 %v1302, %v1278
  %v1753 = vmul.f32 %v1303, %v1279
  %v1754 = vmul.f32 %v1304, %v1280
  %v1755 = vmul.f32 %v1305, %v1281
  %v1756 = vmul.f32 %v1306, %v1282
  %v1757 = vmul.f32 %v1307, %v1283
  %v1758 = vmul.f32 %v1308, %v1276
  %v1759 = vmul.f32 %v1309, %v1277
  %v1760 = vmul.f32 %v1310, %v1278
  %v1761 = vmul.f32 %v1311, %v1279
  %v1762 = vmul.f32 %v1312, %v1280
  %v1763 = vmul.f32 %v1313, %v1281
  %v1764 = vmul.f32 %v1314, %v1282
  %v1765 = vmul.f32 %v1315, %v1283
  %v1766 = vmul.f32 %v1316, %v1276
  %v1767 = vmul.f32 %v1317, %v1277
  %v1768 = vmul.f32 %v1318, %v1278
  %v1769 = vmul.f32 %v1319, %v1279
  %v1770 = vmul.f32 %v1320, %v1280
  %v1771 = vmul.f32 %v1321, %v1281
  %v1772 = vmul.f32 %v1322, %v1282
  %v1773 = vmul.f32 %v1323, %v1283
  %1774 = vadd.xlane.f32.xlu0 %v1734
  %v1775 = vpop.xlane.xlu0 %1774
  %1776 = vadd.xlane.f32.xlu0 %v1735
  %v1777 = vpop.xlane.xlu0 %1776
  %1778 = vadd.xlane.f32.xlu0 %v1736
  %v1779 = vpop.xlane.xlu0 %1778
  %1780 = vadd.xlane.f32.xlu0 %v1737
  %v1781 = vpop.xlane.xlu0 %1780
  %1782 = vadd.xlane.f32.xlu0 %v1738
  %v1783 = vpop.xlane.xlu0 %1782
  %1784 = vadd.xlane.f32.xlu0 %v1739
  %v1785 = vpop.xlane.xlu0 %1784
  %1786 = vadd.xlane.f32.xlu0 %v1740
  %v1787 = vpop.xlane.xlu0 %1786
  %1788 = vadd.xlane.f32.xlu0 %v1741
  %v1789 = vpop.xlane.xlu0 %1788
  %1790 = vadd.xlane.f32.xlu0 %v1742
  %v1791 = vpop.xlane.xlu0 %1790
  %1792 = vadd.xlane.f32.xlu0 %v1743
  %v1793 = vpop.xlane.xlu0 %1792
  %1794 = vadd.xlane.f32.xlu0 %v1744
  %v1795 = vpop.xlane.xlu0 %1794
  %1796 = vadd.xlane.f32.xlu0 %v1745
  %v1797 = vpop.xlane.xlu0 %1796
  %1798 = vadd.xlane.f32.xlu0 %v1746
  %v1799 = vpop.xlane.xlu0 %1798
  %1800 = vadd.xlane.f32.xlu0 %v1747
  %v1801 = vpop.xlane.xlu0 %1800
  %1802 = vadd.xlane.f32.xlu0 %v1748
  %v1803 = vpop.xlane.xlu0 %1802
  %1804 = vadd.xlane.f32.xlu0 %v1749
  %v1805 = vpop.xlane.xlu0 %1804
  %1806 = vadd.xlane.f32.xlu0 %v1750
  %v1807 = vpop.xlane.xlu0 %1806
  %1808 = vadd.xlane.f32.xlu0 %v1751
  %v1809 = vpop.xlane.xlu0 %1808
  %1810 = vadd.xlane.f32.xlu0 %v1752
  %v1811 = vpop.xlane.xlu0 %1810
  %1812 = vadd.xlane.f32.xlu0 %v1753
  %v1813 = vpop.xlane.xlu0 %1812
  %1814 = vadd.xlane.f32.xlu0 %v1754
  %v1815 = vpop.xlane.xlu0 %1814
  %1816 = vadd.xlane.f32.xlu0 %v1755
  %v1817 = vpop.xlane.xlu0 %1816
  %1818 = vadd.xlane.f32.xlu0 %v1756
  %v1819 = vpop.xlane.xlu0 %1818
  %1820 = vadd.xlane.f32.xlu0 %v1757
  %v1821 = vpop.xlane.xlu0 %1820
  %1822 = vadd.xlane.f32.xlu0 %v1758
  %v1823 = vpop.xlane.xlu0 %1822
  %1824 = vadd.xlane.f32.xlu0 %v1759
  %v1825 = vpop.xlane.xlu0 %1824
  %1826 = vadd.xlane.f32.xlu0 %v1760
  %v1827 = vpop.xlane.xlu0 %1826
  %1828 = vadd.xlane.f32.xlu0 %v1761
  %v1829 = vpop.xlane.xlu0 %1828
  %1830 = vadd.xlane.f32.xlu0 %v1762
  %v1831 = vpop.xlane.xlu0 %1830
  %1832 = vadd.xlane.f32.xlu0 %v1763
  %v1833 = vpop.xlane.xlu0 %1832
  %1834 = vadd.xlane.f32.xlu0 %v1764
  %v1835 = vpop.xlane.xlu0 %1834
  %1836 = vadd.xlane.f32.xlu0 %v1765
  %v1837 = vpop.xlane.xlu0 %1836
  %1838 = vadd.xlane.f32.xlu0 %v1766
  %v1839 = vpop.xlane.xlu0 %1838
  %1840 = vadd.xlane.f32.xlu0 %v1767
  %v1841 = vpop.xlane.xlu0 %1840
  %1842 = vadd.xlane.f32.xlu0 %v1768
  %v1843 = vpop.xlane.xlu0 %1842
  %1844 = vadd.xlane.f32.xlu0 %v1769
  %v1845 = vpop.xlane.xlu0 %1844
  %1846 = vadd.xlane.f32.xlu0 %v1770
  %v1847 = vpop.xlane.xlu0 %1846
  %1848 = vadd.xlane.f32.xlu0 %v1771
  %v1849 = vpop.xlane.xlu0 %1848
  %1850 = vadd.xlane.f32.xlu0 %v1772
  %v1851 = vpop.xlane.xlu0 %1850
  %1852 = vadd.xlane.f32.xlu0 %v1773
  %v1853 = vpop.xlane.xlu0 %1852
  %v1894 = vlaneseq
  %v1895 = vshrl.u32 %v1894, 7
  %v1896 = vsub.s32 %v1485, %v1895
  %v1897 = vrot.slane %v1775, %v1896
  %v1898 = vlaneseq
  %v1899 = vshrl.u32 %v1898, 7
  %v1900 = vsub.s32 %v1490, %v1899
  %v1901 = vrot.slane %v1777, %v1900
  %v1902 = vsel %vm1495, %v1901, %v1897
  %v1903 = vlaneseq
  %v1904 = vshrl.u32 %v1903, 7
  %v1905 = vsub.s32 %v1497, %v1904
  %v1906 = vrot.slane %v1779, %v1905
  %v1907 = vsel %vm1502, %v1906, %v1902
  %v1908 = vlaneseq
  %v1909 = vshrl.u32 %v1908, 7
  %v1910 = vsub.s32 %v1504, %v1909
  %v1911 = vrot.slane %v1781, %v1910
  %v1912 = vsel %vm1509, %v1911, %v1907
  %v1913 = vlaneseq
  %v1914 = vshrl.u32 %v1913, 7
  %v1915 = vsub.s32 %v1511, %v1914
  %v1916 = vrot.slane %v1783, %v1915
  %v1917 = vsel %vm1516, %v1916, %v1912
  %v1918 = vlaneseq
  %v1919 = vshrl.u32 %v1918, 7
  %v1920 = vsub.s32 %v1518, %v1919
  %v1921 = vrot.slane %v1785, %v1920
  %v1922 = vsel %vm1523, %v1921, %v1917
  %v1923 = vlaneseq
  %v1924 = vshrl.u32 %v1923, 7
  %v1925 = vsub.s32 %v1525, %v1924
  %v1926 = vrot.slane %v1787, %v1925
  %v1927 = vsel %vm1530, %v1926, %v1922
  %v1928 = vlaneseq
  %v1929 = vshrl.u32 %v1928, 7
  %v1930 = vsub.s32 %v1532, %v1929
  %v1931 = vrot.slane %v1789, %v1930
  %v1932 = vsel %vm1537, %v1931, %v1927
  %v1933 = vlaneseq
  %v1934 = vshrl.u32 %v1933, 7
  %v1935 = vsub.s32 %v1485, %v1934
  %v1936 = vrot.slane %v1791, %v1935
  %v1937 = vlaneseq
  %v1938 = vshrl.u32 %v1937, 7
  %v1939 = vsub.s32 %v1490, %v1938
  %v1940 = vrot.slane %v1793, %v1939
  %v1941 = vsel %vm1495, %v1940, %v1936
  %v1942 = vlaneseq
  %v1943 = vshrl.u32 %v1942, 7
  %v1944 = vsub.s32 %v1497, %v1943
  %v1945 = vrot.slane %v1795, %v1944
  %v1946 = vsel %vm1502, %v1945, %v1941
  %v1947 = vlaneseq
  %v1948 = vshrl.u32 %v1947, 7
  %v1949 = vsub.s32 %v1504, %v1948
  %v1950 = vrot.slane %v1797, %v1949
  %v1951 = vsel %vm1509, %v1950, %v1946
  %v1952 = vlaneseq
  %v1953 = vshrl.u32 %v1952, 7
  %v1954 = vsub.s32 %v1511, %v1953
  %v1955 = vrot.slane %v1799, %v1954
  %v1956 = vsel %vm1516, %v1955, %v1951
  %v1957 = vlaneseq
  %v1958 = vshrl.u32 %v1957, 7
  %v1959 = vsub.s32 %v1518, %v1958
  %v1960 = vrot.slane %v1801, %v1959
  %v1961 = vsel %vm1523, %v1960, %v1956
  %v1962 = vlaneseq
  %v1963 = vshrl.u32 %v1962, 7
  %v1964 = vsub.s32 %v1525, %v1963
  %v1965 = vrot.slane %v1803, %v1964
  %v1966 = vsel %vm1530, %v1965, %v1961
  %v1967 = vlaneseq
  %v1968 = vshrl.u32 %v1967, 7
  %v1969 = vsub.s32 %v1532, %v1968
  %v1970 = vrot.slane %v1805, %v1969
  %v1971 = vsel %vm1537, %v1970, %v1966
  %v1972 = vlaneseq
  %v1973 = vshrl.u32 %v1972, 7
  %v1974 = vsub.s32 %v1485, %v1973
  %v1975 = vrot.slane %v1807, %v1974
  %v1976 = vlaneseq
  %v1977 = vshrl.u32 %v1976, 7
  %v1978 = vsub.s32 %v1490, %v1977
  %v1979 = vrot.slane %v1809, %v1978
  %v1980 = vsel %vm1495, %v1979, %v1975
  %v1981 = vlaneseq
  %v1982 = vshrl.u32 %v1981, 7
  %v1983 = vsub.s32 %v1497, %v1982
  %v1984 = vrot.slane %v1811, %v1983
  %v1985 = vsel %vm1502, %v1984, %v1980
  %v1986 = vlaneseq
  %v1987 = vshrl.u32 %v1986, 7
  %v1988 = vsub.s32 %v1504, %v1987
  %v1989 = vrot.slane %v1813, %v1988
  %v1990 = vsel %vm1509, %v1989, %v1985
  %v1991 = vlaneseq
  %v1992 = vshrl.u32 %v1991, 7
  %v1993 = vsub.s32 %v1511, %v1992
  %v1994 = vrot.slane %v1815, %v1993
  %v1995 = vsel %vm1516, %v1994, %v1990
  %v1996 = vlaneseq
  %v1997 = vshrl.u32 %v1996, 7
  %v1998 = vsub.s32 %v1518, %v1997
  %v1999 = vrot.slane %v1817, %v1998
  %v2000 = vsel %vm1523, %v1999, %v1995
  %v2001 = vlaneseq
  %v2002 = vshrl.u32 %v2001, 7
  %v2003 = vsub.s32 %v1525, %v2002
  %v2004 = vrot.slane %v1819, %v2003
  %v2005 = vsel %vm1530, %v2004, %v2000
  %v2006 = vlaneseq
  %v2007 = vshrl.u32 %v2006, 7
  %v2008 = vsub.s32 %v1532, %v2007
  %v2009 = vrot.slane %v1821, %v2008
  %v2010 = vsel %vm1537, %v2009, %v2005
  %v2011 = vlaneseq
  %v2012 = vshrl.u32 %v2011, 7
  %v2013 = vsub.s32 %v1485, %v2012
  %v2014 = vrot.slane %v1823, %v2013
  %v2015 = vlaneseq
  %v2016 = vshrl.u32 %v2015, 7
  %v2017 = vsub.s32 %v1490, %v2016
  %v2018 = vrot.slane %v1825, %v2017
  %v2019 = vsel %vm1495, %v2018, %v2014
  %v2020 = vlaneseq
  %v2021 = vshrl.u32 %v2020, 7
  %v2022 = vsub.s32 %v1497, %v2021
  %v2023 = vrot.slane %v1827, %v2022
  %v2024 = vsel %vm1502, %v2023, %v2019
  %v2025 = vlaneseq
  %v2026 = vshrl.u32 %v2025, 7
  %v2027 = vsub.s32 %v1504, %v2026
  %v2028 = vrot.slane %v1829, %v2027
  %v2029 = vsel %vm1509, %v2028, %v2024
  %v2030 = vlaneseq
  %v2031 = vshrl.u32 %v2030, 7
  %v2032 = vsub.s32 %v1511, %v2031
  %v2033 = vrot.slane %v1831, %v2032
  %v2034 = vsel %vm1516, %v2033, %v2029
  %v2035 = vlaneseq
  %v2036 = vshrl.u32 %v2035, 7
  %v2037 = vsub.s32 %v1518, %v2036
  %v2038 = vrot.slane %v1833, %v2037
  %v2039 = vsel %vm1523, %v2038, %v2034
  %v2040 = vlaneseq
  %v2041 = vshrl.u32 %v2040, 7
  %v2042 = vsub.s32 %v1525, %v2041
  %v2043 = vrot.slane %v1835, %v2042
  %v2044 = vsel %vm1530, %v2043, %v2039
  %v2045 = vlaneseq
  %v2046 = vshrl.u32 %v2045, 7
  %v2047 = vsub.s32 %v1532, %v2046
  %v2048 = vrot.slane %v1837, %v2047
  %v2049 = vsel %vm1537, %v2048, %v2044
  %v2050 = vlaneseq
  %v2051 = vshrl.u32 %v2050, 7
  %v2052 = vsub.s32 %v1485, %v2051
  %v2053 = vrot.slane %v1839, %v2052
  %v2054 = vlaneseq
  %v2055 = vshrl.u32 %v2054, 7
  %v2056 = vsub.s32 %v1490, %v2055
  %v2057 = vrot.slane %v1841, %v2056
  %v2058 = vsel %vm1495, %v2057, %v2053
  %v2059 = vlaneseq
  %v2060 = vshrl.u32 %v2059, 7
  %v2061 = vsub.s32 %v1497, %v2060
  %v2062 = vrot.slane %v1843, %v2061
  %v2063 = vsel %vm1502, %v2062, %v2058
  %v2064 = vlaneseq
  %v2065 = vshrl.u32 %v2064, 7
  %v2066 = vsub.s32 %v1504, %v2065
  %v2067 = vrot.slane %v1845, %v2066
  %v2068 = vsel %vm1509, %v2067, %v2063
  %v2069 = vlaneseq
  %v2070 = vshrl.u32 %v2069, 7
  %v2071 = vsub.s32 %v1511, %v2070
  %v2072 = vrot.slane %v1847, %v2071
  %v2073 = vsel %vm1516, %v2072, %v2068
  %v2074 = vlaneseq
  %v2075 = vshrl.u32 %v2074, 7
  %v2076 = vsub.s32 %v1518, %v2075
  %v2077 = vrot.slane %v1849, %v2076
  %v2078 = vsel %vm1523, %v2077, %v2073
  %v2079 = vlaneseq
  %v2080 = vshrl.u32 %v2079, 7
  %v2081 = vsub.s32 %v1525, %v2080
  %v2082 = vrot.slane %v1851, %v2081
  %v2083 = vsel %vm1530, %v2082, %v2078
  %v2084 = vlaneseq
  %v2085 = vshrl.u32 %v2084, 7
  %v2086 = vsub.s32 %v1532, %v2085
  %v2087 = vrot.slane %v1853, %v2086
  %v2088 = vsel %vm1537, %v2087, %v2083
  %v2089 = vsel %vm1695, %v1971, %v1932
  %v2090 = vsel %vm1697, %v2010, %v2089
  %v2091 = vsel %vm1699, %v2049, %v2090
  %v2092 = vsel %vm1701, %v2088, %v2091
  %v2094 = vsel %vm1704, %v2092, 0.0
  %2095 = vadd.xlane.f32.xlu0 %v2094
  %v2096 = vpop.xlane.xlu0 %2095
  %v2097 = vld [vmem:[%s4] sm:$0x1f]
  %v2098 = vadd.f32 %v2096, %v2097
  %vm2099 = vcmp.ge.f32.partialorder %v2098, 0.0
  %v2100 = vmul.f32 %v2098, 0.01
  %v2101 = vsel %vm2099, %v2098, %v2100
  %v2102 = vsel %vm1713, %v2101, -inf
  %v2103 = vrot.slane %v2102, 4
  %v2104 = vmax.f32 %v2102, %v2103
  %v2105 = vrot.slane %v2104, 2
  %v2106 = vmax.f32 %v2104, %v2105
  %v2107 = vrot.slane %v2106, 1
  %v2108 = vmax.f32 %v2106, %v2107
  %v2109 = vsub.f32 %v2101, %v2108
  %v2110 = vmul.f32 %v2109, 1.442695
  %v2111 = vpow.pop %v2110
  %v2112 = vsel %vm1713, %v2111, 0.0
  %v2113 = vrot.slane %v2112, 4
  %v2114 = vadd.f32 %v2112, %v2113
  %v2115 = vrot.slane %v2114, 2
  %v2116 = vadd.f32 %v2114, %v2115
  %v2117 = vrot.slane %v2116, 1
  %v2118 = vadd.f32 %v2116, %v2117
  %v2119 = vrcp.pop %v2118
  %v2120 = vmul.f32 %v2111, %v2119
  %2122 = vrot.lane.b32.xlu0 %v2120, 1
  %v2123 = vpop.permute.xlu0 %2122
  %vm2125 = vcmask 12296
  %2126 = vst.msk [vmem:[%s5] sm:$0x1f] %vm2125, %v2123
  // Predicated region
  $region22: #{forward.3} parent=0 // pred_check
    _
  $region23: #{forward.3} parent=0 // pred_check_branch
    %2128 = sbr.rel (0) target = $region25
  $region24: #{forward.3} parent=0 // pred_region
    _
  $region25: #{forward.3} parent=0 // pred_fallthru
    _
  // Predicated region
  $region26: #{forward.3} parent=0 // pred_check
    _
  $region27: #{forward.3} parent=0 // pred_check_branch
    %2130 = sbr.rel (0) target = $region29
  $region28: #{forward.3} parent=0 // pred_region
    _
  $region29: #{forward.3} parent=0 // pred_fallthru
    _

</llo_original>
